<compile_context>
chip_gen: v5e
topology: v5e:2x2
jax: 0.10.0
libtpu: 0.0.40
codegen_flags: <defaults>
</compile_context>

<pallas_src>
import math

import jax
import jax.numpy as jnp
from jax.experimental import pallas as pl
from jax.experimental.pallas import tpu as pltpu


# -----------------------------------------------------------------------------
# Kernel
# -----------------------------------------------------------------------------
def make_encoder_kernel(Bt, S, D, H):
    hd = D // H
    gelu_c = math.sqrt(2.0 / math.pi)
    bf16 = jnp.bfloat16

    def layernorm(z, g, b):
        mu = jnp.mean(z, axis=-1, keepdims=True)
        var = jnp.mean(jnp.square(z - mu), axis=-1, keepdims=True)
        return (z - mu) * jax.lax.rsqrt(var + 1e-5) * g + b

    def kernel(x_ref,
               ln1g_ref, ln1b_ref,
               wqkv_ref, bqkv_ref, wo_ref, bo_ref,
               ln2g_ref, ln2b_ref,
               w1_ref, b1_ref, w2_ref, b2_ref,
               out_ref):
        layer = pl.program_id(1)

        # out_ref is resident across the (innermost) layer axis and carries the
        # residual stream between blocks.  Output blocks are never preloaded
        # from HBM, so seed from x once per batch block (x aliases the output
        # buffer in HBM; blocks are disjoint per batch index so no hazard).
        @pl.when(layer == 0)
        def _():
            out_ref[...] = x_ref[...]

        x = out_ref[...]                                      # (Bt, S, D) f32

        # ---------------- attention branch (pre-LN) ----------------
        h = layernorm(x, ln1g_ref[0], ln1b_ref[0])            # (Bt, S, D) f32
        h2 = h.reshape(Bt * S, D).astype(bf16)                # merge leading dims
        # Fused QKV projection: one full-width (D, 3D) MXU matmul; the
        # 1/sqrt(hd) softmax scale is pre-folded into the q third.
        qkv = jnp.dot(h2, wqkv_ref[0],
                      preferred_element_type=jnp.float32) + bqkv_ref[0]  # (Bt*S, 3D)

        ctx_rows = []
        for b in range(Bt):                                   # static unroll (Bt small)
            rows = qkv[b * S:(b + 1) * S].astype(bf16)        # (S, 3D) bf16

            def split_heads(base, rows=rows):
                # lane slices + leading-axis stack -> (H, S, hd); avoids
                # minor-dim reshapes / 4-D transposes inside the kernel.
                return jnp.stack([rows[:, base + hh * hd: base + (hh + 1) * hd]
                                  for hh in range(H)], axis=0)

            qh = split_heads(0)
            kh = split_heads(D)
            vh = split_heads(2 * D)

            scores = jnp.einsum('hqe,hke->hqk', qh, kh,
                                preferred_element_type=jnp.float32)   # (H, S, S) f32
            m = jnp.max(scores, axis=-1, keepdims=True)
            e = jnp.exp(scores - m)
            p = e * pl.reciprocal(jnp.sum(e, axis=-1, keepdims=True), approx=True)

            ctx = jnp.einsum('hqk,hke->hqe', p.astype(bf16), vh,
                             preferred_element_type=jnp.float32)      # (H, S, hd)
            # concat heads back along the lane axis -> (S, D)
            ctx_rows.append(jnp.concatenate([ctx[hh] for hh in range(H)], axis=-1))

        ctx_all = ctx_rows[0] if Bt == 1 else jnp.concatenate(ctx_rows, axis=0)
        # Single full-width output projection against the original (D, D) wo.
        attn = jnp.dot(ctx_all.astype(bf16), wo_ref[0],
                       preferred_element_type=jnp.float32) + bo_ref[0]  # (Bt*S, D)
        x = x + attn.reshape(Bt, S, D)                        # residual 1

        # ---------------- MLP branch (pre-LN) ----------------
        h = layernorm(x, ln2g_ref[0], ln2b_ref[0])
        z = jnp.dot(h.reshape(Bt * S, D).astype(bf16), w1_ref[0],
                    preferred_element_type=jnp.float32) + b1_ref[0]     # (Bt*S, I)
        z = 0.5 * z * (1.0 + jnp.tanh(gelu_c * (z + 0.044715 * (z * z * z))))
        z = jnp.dot(z.astype(bf16), w2_ref[0],
                    preferred_element_type=jnp.float32) + b2_ref[0]     # (Bt*S, D)
        x = x + z.reshape(Bt, S, D)                           # residual 2

        out_ref[...] = x

    return kernel


# -----------------------------------------------------------------------------
# Wrapper
# -----------------------------------------------------------------------------
def _pick_batch_block(B):
    # 2-4 items per block amortizes per-layer weight streaming (HBM-bound on
    # v5e) while keeping >=2 blocks along the "parallel" axis so both v7x
    # TensorCores stay busy.
    best = 1
    for bt in range(1, min(B, 4) + 1):
        if B % bt == 0 and ((B == 1 and bt == 1) or B // bt >= 2):
            best = bt
    return best


def encoder_forward(x, params, num_heads, batch_block=None):
    B, S, D = x.shape
    L, _, I = params['w1'].shape
    H = num_heads
    hd = D // H
    assert D % H == 0
    bf16, f32 = jnp.bfloat16, jnp.float32

    Bt = _pick_batch_block(B) if batch_block is None else batch_block
    assert B % Bt == 0

    # ---- host-side weight preprocessing (plain JAX, runs once) ----
    # Fold the 1/sqrt(hd) attention scale into the q third of wqkv / bqkv.
    scale = jnp.concatenate([jnp.full((D,), 1.0 / math.sqrt(hd), f32),
                             jnp.ones((2 * D,), f32)])
    wqkv = (params['wqkv'] * scale).astype(bf16)          # (L, D, 3D) bf16
    bqkv = (params['bqkv'] * scale).astype(f32)           # (L, 1, 3D) f32
    wo = params['wo'].astype(bf16)                        # (L, D, D)  bf16
    w1 = params['w1'].astype(bf16)                        # (L, D, I)  bf16
    w2 = params['w2'].astype(bf16)                        # (L, I, D)  bf16

    kernel = make_encoder_kernel(Bt, S, D, H)

    def per_layer(*dims):
        nd = len(dims)
        return pl.BlockSpec((1,) + dims, lambda bi, l, nd=nd: (l,) + (0,) * nd)

    act_spec = pl.BlockSpec((Bt, S, D), lambda bi, l: (bi, 0, 0))

    grid_spec = pltpu.PrefetchScalarGridSpec(
        num_scalar_prefetch=0,
        grid=(B // Bt, L),              # batch blocks outer (parallel), layers inner
        in_specs=[
            act_spec,                   # x (HBM buffer aliased to the output)
            per_layer(1, D),            # ln1_g
            per_layer(1, D),            # ln1_b
            per_layer(D, 3 * D),        # wqkv (bf16, q-scale folded)
            per_layer(1, 3 * D),        # bqkv (f32, q-scale folded)
            per_layer(D, D),            # wo   (bf16)
            per_layer(1, D),            # bo
            per_layer(1, D),            # ln2_g
            per_layer(1, D),            # ln2_b
            per_layer(D, I),            # w1   (bf16)
            per_layer(1, I),            # b1
            per_layer(I, D),            # w2   (bf16)
            per_layer(1, D),            # b2
        ],
        out_specs=act_spec,             # resident residual stream
    )

    # VMEM budget from the actual block byte sum (double-buffered inputs +
    # resident output + intermediate headroom), capped below v7x's 64 MiB.
    def nbytes(shape, dt):
        n = 1
        for s in shape:
            n *= s
        return n * jnp.dtype(dt).itemsize

    weight_bytes = (nbytes((D, 3 * D), bf16) + nbytes((1, 3 * D), f32)
                    + nbytes((D, D), bf16) + nbytes((D, I), bf16)
                    + nbytes((I, D), bf16) + nbytes((1, I), f32)
                    + 6 * nbytes((1, D), f32))
    act_bytes = nbytes((Bt, S, D), f32)
    interm_bytes = (2 * nbytes((Bt * S, 3 * D), f32)
                    + 3 * nbytes((H, S, S), f32)
                    + 2 * nbytes((Bt * S, I), f32))
    vmem_limit = 2 * (weight_bytes + 2 * act_bytes) + interm_bytes + (8 << 20)
    vmem_limit = int(min(56 << 20, max(24 << 20, vmem_limit)))

    return pl.pallas_call(
        kernel,
        out_shape=jax.ShapeDtypeStruct((B, S, D), jnp.float32),
        grid_spec=grid_spec,
        input_output_aliases={0: 0},    # x's HBM buffer doubles as the output
        compiler_params=pltpu.CompilerParams(
            dimension_semantics=("parallel", "arbitrary"),
            vmem_limit_bytes=vmem_limit),
    )(
        x,
        params['ln1_g'], params['ln1_b'],
        wqkv, bqkv, wo, params['bo'],
        params['ln2_g'], params['ln2_b'],
        w1, params['b1'], w2, params['b2'],
    )


# -----------------------------------------------------------------------------
# Pure-JAX reference (mirrors the PyTorch forward exactly, dropout = identity)
# -----------------------------------------------------------------------------
def encoder_reference(x, params, num_heads):
    L = params['ln1_g'].shape[0]
    B, S, D = x.shape
    hd = D // num_heads

    def ln(z, g, b):
        mu = jnp.mean(z, axis=-1, keepdims=True)
        var = jnp.mean((z - mu) ** 2, axis=-1, keepdims=True)
        return (z - mu) * jax.lax.rsqrt(var + 1e-5) * g + b

    for l in range(L):
        h = ln(x, params['ln1_g'][l, 0], params['ln1_b'][l, 0])
        qkv = h @ params['wqkv'][l] + params['bqkv'][l, 0]
        q, k, v = jnp.split(qkv, 3, axis=-1)
        q = q.reshape(B, S, num_heads, hd).transpose(0, 2, 1, 3)
        k = k.reshape(B, S, num_heads, hd).transpose(0, 2, 1, 3)
        v = v.reshape(B, S, num_heads, hd).transpose(0, 2, 1, 3)
        scores = jnp.einsum('bhqd,bhkd->bhqk', q, k) / math.sqrt(hd)
        probs = jax.nn.softmax(scores, axis=-1)
        a = jnp.einsum('bhqk,bhkd->bhqd', probs, v)
        a = a.transpose(0, 2, 1, 3).reshape(B, S, D)
        a = a @ params['wo'][l] + params['bo'][l, 0]
        x = x + a
        h = ln(x, params['ln2_g'][l, 0], params['ln2_b'][l, 0])
        z = h @ params['w1'][l] + params['b1'][l, 0]
        z = 0.5 * z * (1.0 + jnp.tanh(math.sqrt(2.0 / math.pi)
                                      * (z + 0.044715 * z ** 3)))
        z = z @ params['w2'][l] + params['b2'][l, 0]
        x = x + z
    return x


# -----------------------------------------------------------------------------
# Main
# -----------------------------------------------------------------------------
if __name__ == "__main__":
    # config: hidden_size=32, num_attention_heads=4, intermediate_size=64,
    #         num_hidden_layers=2, qkv_bias=True, dropout probs = 0 (eval)
    B, S, D, H, I, L = 2, 8, 32, 4, 64, 2

    key = jax.random.PRNGKey(0)
    keys = jax.random.split(key, 16)

    def nrm(k, shape, scale=0.02):
        return (scale * jax.random.normal(k, shape)).astype(jnp.float32)

    params = {
        'ln1_g': jnp.ones((L, 1, D), jnp.float32),
        'ln1_b': jnp.zeros((L, 1, D), jnp.float32),
        'wqkv':  nrm(keys[0], (L, D, 3 * D)),
        'bqkv':  nrm(keys[1], (L, 1, 3 * D)),
        'wo':    nrm(keys[2], (L, D, D)),
        'bo':    nrm(keys[3], (L, 1, D)),
        'ln2_g': jnp.ones((L, 1, D), jnp.float32),
        'ln2_b': jnp.zeros((L, 1, D), jnp.float32),
        'w1':    nrm(keys[4], (L, D, I)),
        'b1':    nrm(keys[5], (L, 1, I)),
        'w2':    nrm(keys[6], (L, I, D)),
        'b2':    nrm(keys[7], (L, 1, D)),
    }

    x = jax.random.normal(keys[8], (B, S, D), dtype=jnp.float32)

    # Reference is computed (and finished) BEFORE the kernel call because x's
    # buffer is aliased/donated to the kernel output.  The reference uses the
    # same bf16-rounded matmul weights the kernel stores, so the remaining
    # difference is only bf16 MXU activation rounding + approx reciprocal.
    params_ref = dict(params)
    for name in ('wqkv', 'wo', 'w1', 'w2'):
        params_ref[name] = params[name].astype(jnp.bfloat16).astype(jnp.float32)
    ref = encoder_reference(x, params_ref, num_heads=H)
    ref = jax.block_until_ready(ref)

    out = encoder_forward(x, params, num_heads=H)
    out = jax.block_until_ready(out)

    assert out.shape == (B, S, D)
    assert jnp.allclose(out, ref, atol=5e-3, rtol=5e-3), "mismatch vs reference"

    print("KERNEL_OK")
</pallas_src>

<mosaic_0001>
module attributes {stable_mosaic.version = 11 : i64} {
  func.func @kernel(%arg0: i32, %arg1: i32, %arg2: memref<1x8x32xf32, #tpu.memory_space<vmem>>, %arg3: memref<1x1x32xf32, #tpu.memory_space<vmem>>, %arg4: memref<1x1x32xf32, #tpu.memory_space<vmem>>, %arg5: memref<1x32x96xbf16, #tpu.memory_space<vmem>>, %arg6: memref<1x1x96xf32, #tpu.memory_space<vmem>>, %arg7: memref<1x32x32xbf16, #tpu.memory_space<vmem>>, %arg8: memref<1x1x32xf32, #tpu.memory_space<vmem>>, %arg9: memref<1x1x32xf32, #tpu.memory_space<vmem>>, %arg10: memref<1x1x32xf32, #tpu.memory_space<vmem>>, %arg11: memref<1x32x64xbf16, #tpu.memory_space<vmem>>, %arg12: memref<1x1x64xf32, #tpu.memory_space<vmem>>, %arg13: memref<1x64x32xbf16, #tpu.memory_space<vmem>>, %arg14: memref<1x1x32xf32, #tpu.memory_space<vmem>>, %arg15: memref<1x8x32xf32, #tpu.memory_space<vmem>>) attributes {dimension_semantics = [#tpu.dimension_semantics<parallel>, #tpu.dimension_semantics<arbitrary>], iteration_bounds = array<i64: 2, 2>, scalar_prefetch = 0 : i64, scratch_operands = 0 : i64, tpu.core_type = #tpu.core_type<tc>, window_params = [{transform_indices = @transform_0, window_bounds = array<i64: 1, 8, 32>}, {transform_indices = @transform_1, window_bounds = array<i64: 1, 1, 32>}, {transform_indices = @transform_2, window_bounds = array<i64: 1, 1, 32>}, {transform_indices = @transform_3, window_bounds = array<i64: 1, 32, 96>}, {transform_indices = @transform_4, window_bounds = array<i64: 1, 1, 96>}, {transform_indices = @transform_5, window_bounds = array<i64: 1, 32, 32>}, {transform_indices = @transform_6, window_bounds = array<i64: 1, 1, 32>}, {transform_indices = @transform_7, window_bounds = array<i64: 1, 1, 32>}, {transform_indices = @transform_8, window_bounds = array<i64: 1, 1, 32>}, {transform_indices = @transform_9, window_bounds = array<i64: 1, 32, 64>}, {transform_indices = @transform_10, window_bounds = array<i64: 1, 1, 64>}, {transform_indices = @transform_11, window_bounds = array<i64: 1, 64, 32>}, {transform_indices = @transform_12, window_bounds = array<i64: 1, 1, 32>}, {transform_indices = @transform_13, window_bounds = array<i64: 1, 8, 32>}]} {
    %c0_i32 = arith.constant 0 : i32
    %0 = arith.cmpi eq, %arg1, %c0_i32 : i32
    %1 = arith.extui %0 : i1 to i32
    %c0_i32_0 = arith.constant 0 : i32
    %2 = arith.cmpi ne, %1, %c0_i32_0 : i32
    scf.if %2 {
      %c0_63 = arith.constant 0 : index
      %c0_64 = arith.constant 0 : index
      %c0_65 = arith.constant 0 : index
      %162 = vector.load %arg2[%c0_63, %c0_64, %c0_65] : memref<1x8x32xf32, #tpu.memory_space<vmem>>, vector<1x8x32xf32>
      %c0_66 = arith.constant 0 : index
      %c0_67 = arith.constant 0 : index
      %c0_68 = arith.constant 0 : index
      %163 = vector.load %arg15[%c0_66, %c0_67, %c0_68] : memref<1x8x32xf32, #tpu.memory_space<vmem>>, vector<1x8x32xf32>
      tpu.vector_store %arg15[%c0_66, %c0_67, %c0_68], %162 {strides = array<i32>} : memref<1x8x32xf32, #tpu.memory_space<vmem>>, vector<1x8x32xf32>,
    } else {
    }
    %c0 = arith.constant 0 : index
    %c0_1 = arith.constant 0 : index
    %c0_2 = arith.constant 0 : index
    %3 = vector.load %arg15[%c0, %c0_1, %c0_2] : memref<1x8x32xf32, #tpu.memory_space<vmem>>, vector<1x8x32xf32>
    %c0_3 = arith.constant 0 : index
    %c0_4 = arith.constant 0 : index
    %c0_5 = arith.constant 0 : index
    %4 = vector.load %arg3[%c0_3, %c0_4, %c0_5] : memref<1x1x32xf32, #tpu.memory_space<vmem>>, vector<1x1x32xf32>
    %5 = vector.shape_cast %4 : vector<1x1x32xf32> to vector<1x32xf32>
    %c0_6 = arith.constant 0 : index
    %c0_7 = arith.constant 0 : index
    %c0_8 = arith.constant 0 : index
    %6 = vector.load %arg4[%c0_6, %c0_7, %c0_8] : memref<1x1x32xf32, #tpu.memory_space<vmem>>, vector<1x1x32xf32>
    %7 = vector.shape_cast %6 : vector<1x1x32xf32> to vector<1x32xf32>
    %cst = arith.constant dense<0.000000e+00> : vector<1x8xf32>
    %8 = vector.multi_reduction <add>, %3, %cst [2] : vector<1x8x32xf32> to vector<1x8xf32>
    %9 = vector.shape_cast %8 : vector<1x8xf32> to vector<1x8x1xf32>
    %cst_9 = arith.constant 3.200000e+01 : f32
    %10 = vector.broadcast %cst_9 : f32 to vector<1x8x1xf32>
    %11 = arith.divf %9, %10 : vector<1x8x1xf32>
    %12 = vector.broadcast %11 : vector<1x8x1xf32> to vector<1x8x32xf32>
    %13 = arith.subf %3, %12 : vector<1x8x32xf32>
    %14 = arith.mulf %13, %13 : vector<1x8x32xf32>
    %cst_10 = arith.constant dense<0.000000e+00> : vector<1x8xf32>
    %15 = vector.multi_reduction <add>, %14, %cst_10 [2] : vector<1x8x32xf32> to vector<1x8xf32>
    %16 = vector.shape_cast %15 : vector<1x8xf32> to vector<1x8x1xf32>
    %cst_11 = arith.constant 3.200000e+01 : f32
    %17 = vector.broadcast %cst_11 : f32 to vector<1x8x1xf32>
    %18 = arith.divf %16, %17 : vector<1x8x1xf32>
    %19 = vector.broadcast %11 : vector<1x8x1xf32> to vector<1x8x32xf32>
    %20 = arith.subf %3, %19 : vector<1x8x32xf32>
    %cst_12 = arith.constant 9.99999974E-6 : f32
    %21 = vector.broadcast %cst_12 : f32 to vector<1x8x1xf32>
    %22 = arith.addf %18, %21 : vector<1x8x1xf32>
    %23 = math.rsqrt %22 : vector<1x8x1xf32>
    %24 = vector.broadcast %23 : vector<1x8x1xf32> to vector<1x8x32xf32>
    %25 = arith.mulf %20, %24 : vector<1x8x32xf32>
    %26 = vector.shape_cast %5 : vector<1x32xf32> to vector<1x1x32xf32>
    %27 = vector.broadcast %26 : vector<1x1x32xf32> to vector<1x8x32xf32>
    %28 = arith.mulf %25, %27 : vector<1x8x32xf32>
    %29 = vector.shape_cast %7 : vector<1x32xf32> to vector<1x1x32xf32>
    %30 = vector.broadcast %29 : vector<1x1x32xf32> to vector<1x8x32xf32>
    %31 = arith.addf %28, %30 : vector<1x8x32xf32>
    %32 = vector.shape_cast %31 : vector<1x8x32xf32> to vector<8x32xf32>
    %33 = arith.truncf %32 : vector<8x32xf32> to vector<8x32xbf16>
    %c0_13 = arith.constant 0 : index
    %c0_14 = arith.constant 0 : index
    %c0_15 = arith.constant 0 : index
    %34 = vector.load %arg5[%c0_13, %c0_14, %c0_15] : memref<1x32x96xbf16, #tpu.memory_space<vmem>>, vector<1x32x96xbf16>
    %35 = vector.shape_cast %34 : vector<1x32x96xbf16> to vector<32x96xbf16>
    %cst_16 = arith.constant dense<0.000000e+00> : vector<8x96xf32>
    %36 = tpu.matmul %33, %35, %cst_16 {dimension_numbers = #tpu.dot_dimension_numbers<[1], [0], [0], [1], [0, 0, 1, 1], [], []>} : vector<8x32xbf16>, vector<32x96xbf16>, vector<8x96xf32> -> vector<8x96xf32>
    %c0_17 = arith.constant 0 : index
    %c0_18 = arith.constant 0 : index
    %c0_19 = arith.constant 0 : index
    %37 = vector.load %arg6[%c0_17, %c0_18, %c0_19] : memref<1x1x96xf32, #tpu.memory_space<vmem>>, vector<1x1x96xf32>
    %38 = vector.shape_cast %37 : vector<1x1x96xf32> to vector<1x96xf32>
    %39 = vector.broadcast %38 : vector<1x96xf32> to vector<8x96xf32>
    %40 = arith.addf %36, %39 : vector<8x96xf32>
    %41 = arith.truncf %40 : vector<8x96xf32> to vector<8x96xbf16>
    %42 = vector.extract_strided_slice %41 {offsets = [0, 0], sizes = [8, 8], strides = [1, 1]} : vector<8x96xbf16> to vector<8x8xbf16>
    %43 = vector.extract_strided_slice %41 {offsets = [0, 8], sizes = [8, 8], strides = [1, 1]} : vector<8x96xbf16> to vector<8x8xbf16>
    %44 = vector.extract_strided_slice %41 {offsets = [0, 16], sizes = [8, 8], strides = [1, 1]} : vector<8x96xbf16> to vector<8x8xbf16>
    %45 = vector.extract_strided_slice %41 {offsets = [0, 24], sizes = [8, 8], strides = [1, 1]} : vector<8x96xbf16> to vector<8x8xbf16>
    %46 = vector.shape_cast %42 : vector<8x8xbf16> to vector<1x8x8xbf16>
    %47 = vector.shape_cast %43 : vector<8x8xbf16> to vector<1x8x8xbf16>
    %48 = vector.shape_cast %44 : vector<8x8xbf16> to vector<1x8x8xbf16>
    %49 = vector.shape_cast %45 : vector<8x8xbf16> to vector<1x8x8xbf16>
    %50 = tpu.concatenate %46, %47, %48, %49 in 0 : vector<1x8x8xbf16>, vector<1x8x8xbf16>, vector<1x8x8xbf16>, vector<1x8x8xbf16> -> vector<4x8x8xbf16>
    %51 = vector.extract_strided_slice %41 {offsets = [0, 32], sizes = [8, 8], strides = [1, 1]} : vector<8x96xbf16> to vector<8x8xbf16>
    %52 = vector.extract_strided_slice %41 {offsets = [0, 40], sizes = [8, 8], strides = [1, 1]} : vector<8x96xbf16> to vector<8x8xbf16>
    %53 = vector.extract_strided_slice %41 {offsets = [0, 48], sizes = [8, 8], strides = [1, 1]} : vector<8x96xbf16> to vector<8x8xbf16>
    %54 = vector.extract_strided_slice %41 {offsets = [0, 56], sizes = [8, 8], strides = [1, 1]} : vector<8x96xbf16> to vector<8x8xbf16>
    %55 = vector.shape_cast %51 : vector<8x8xbf16> to vector<1x8x8xbf16>
    %56 = vector.shape_cast %52 : vector<8x8xbf16> to vector<1x8x8xbf16>
    %57 = vector.shape_cast %53 : vector<8x8xbf16> to vector<1x8x8xbf16>
    %58 = vector.shape_cast %54 : vector<8x8xbf16> to vector<1x8x8xbf16>
    %59 = tpu.concatenate %55, %56, %57, %58 in 0 : vector<1x8x8xbf16>, vector<1x8x8xbf16>, vector<1x8x8xbf16>, vector<1x8x8xbf16> -> vector<4x8x8xbf16>
    %60 = vector.extract_strided_slice %41 {offsets = [0, 64], sizes = [8, 8], strides = [1, 1]} : vector<8x96xbf16> to vector<8x8xbf16>
    %61 = vector.extract_strided_slice %41 {offsets = [0, 72], sizes = [8, 8], strides = [1, 1]} : vector<8x96xbf16> to vector<8x8xbf16>
    %62 = vector.extract_strided_slice %41 {offsets = [0, 80], sizes = [8, 8], strides = [1, 1]} : vector<8x96xbf16> to vector<8x8xbf16>
    %63 = vector.extract_strided_slice %41 {offsets = [0, 88], sizes = [8, 8], strides = [1, 1]} : vector<8x96xbf16> to vector<8x8xbf16>
    %64 = vector.shape_cast %60 : vector<8x8xbf16> to vector<1x8x8xbf16>
    %65 = vector.shape_cast %61 : vector<8x8xbf16> to vector<1x8x8xbf16>
    %66 = vector.shape_cast %62 : vector<8x8xbf16> to vector<1x8x8xbf16>
    %67 = vector.shape_cast %63 : vector<8x8xbf16> to vector<1x8x8xbf16>
    %68 = tpu.concatenate %64, %65, %66, %67 in 0 : vector<1x8x8xbf16>, vector<1x8x8xbf16>, vector<1x8x8xbf16>, vector<1x8x8xbf16> -> vector<4x8x8xbf16>
    "tpu.trace_start"() <{level = 10 : i32, message = "hqe,hke->hqk"}> : () -> ()
    %cst_20 = arith.constant dense<0.000000e+00> : vector<4x8x8xf32>
    %69 = tpu.matmul %50, %59, %cst_20 {dimension_numbers = #tpu.dot_dimension_numbers<[2], [2], [1], [1], [0, 0, 0, 1, 1, 1], [0], [0]>} : vector<4x8x8xbf16>, vector<4x8x8xbf16>, vector<4x8x8xf32> -> vector<4x8x8xf32>
    "tpu.trace_stop"() : () -> ()
    %cst_21 = arith.constant dense<0xFF800000> : vector<4x8xf32>
    %70 = vector.multi_reduction <maximumf>, %69, %cst_21 [2] : vector<4x8x8xf32> to vector<4x8xf32>
    %71 = vector.shape_cast %70 : vector<4x8xf32> to vector<4x8x1xf32>
    %72 = vector.broadcast %71 : vector<4x8x1xf32> to vector<4x8x8xf32>
    %73 = arith.subf %69, %72 : vector<4x8x8xf32>
    %74 = math.exp %73 : vector<4x8x8xf32>
    %cst_22 = arith.constant dense<0.000000e+00> : vector<4x8xf32>
    %75 = vector.multi_reduction <add>, %74, %cst_22 [2] : vector<4x8x8xf32> to vector<4x8xf32>
    %76 = vector.shape_cast %75 : vector<4x8xf32> to vector<4x8x1xf32>
    %77 = tpu.reciprocal %76 {approx = true} : vector<4x8x1xf32> -> vector<4x8x1xf32>
    %78 = vector.broadcast %77 : vector<4x8x1xf32> to vector<4x8x8xf32>
    %79 = arith.mulf %74, %78 : vector<4x8x8xf32>
    %80 = arith.truncf %79 : vector<4x8x8xf32> to vector<4x8x8xbf16>
    "tpu.trace_start"() <{level = 10 : i32, message = "hqk,hke->hqe"}> : () -> ()
    %cst_23 = arith.constant dense<0.000000e+00> : vector<4x8x8xf32>
    %81 = tpu.matmul %80, %68, %cst_23 {dimension_numbers = #tpu.dot_dimension_numbers<[2], [1], [1], [2], [0, 0, 0, 1, 1, 2], [0], [0]>} : vector<4x8x8xbf16>, vector<4x8x8xbf16>, vector<4x8x8xf32> -> vector<4x8x8xf32>
    "tpu.trace_stop"() : () -> ()
    %82 = vector.extract_strided_slice %81 {offsets = [0, 0, 0], sizes = [1, 8, 8], strides = [1, 1, 1]} : vector<4x8x8xf32> to vector<1x8x8xf32>
    %83 = vector.shape_cast %82 : vector<1x8x8xf32> to vector<8x8xf32>
    %84 = vector.extract_strided_slice %81 {offsets = [1, 0, 0], sizes = [1, 8, 8], strides = [1, 1, 1]} : vector<4x8x8xf32> to vector<1x8x8xf32>
    %85 = vector.shape_cast %84 : vector<1x8x8xf32> to vector<8x8xf32>
    %86 = vector.extract_strided_slice %81 {offsets = [2, 0, 0], sizes = [1, 8, 8], strides = [1, 1, 1]} : vector<4x8x8xf32> to vector<1x8x8xf32>
    %87 = vector.shape_cast %86 : vector<1x8x8xf32> to vector<8x8xf32>
    %88 = vector.extract_strided_slice %81 {offsets = [3, 0, 0], sizes = [1, 8, 8], strides = [1, 1, 1]} : vector<4x8x8xf32> to vector<1x8x8xf32>
    %89 = vector.shape_cast %88 : vector<1x8x8xf32> to vector<8x8xf32>
    %90 = tpu.concatenate %83, %85, %87, %89 in 1 : vector<8x8xf32>, vector<8x8xf32>, vector<8x8xf32>, vector<8x8xf32> -> vector<8x32xf32>
    %91 = arith.truncf %90 : vector<8x32xf32> to vector<8x32xbf16>
    %c0_24 = arith.constant 0 : index
    %c0_25 = arith.constant 0 : index
    %c0_26 = arith.constant 0 : index
    %92 = vector.load %arg7[%c0_24, %c0_25, %c0_26] : memref<1x32x32xbf16, #tpu.memory_space<vmem>>, vector<1x32x32xbf16>
    %93 = vector.shape_cast %92 : vector<1x32x32xbf16> to vector<32x32xbf16>
    %cst_27 = arith.constant dense<0.000000e+00> : vector<8x32xf32>
    %94 = tpu.matmul %91, %93, %cst_27 {dimension_numbers = #tpu.dot_dimension_numbers<[1], [0], [0], [1], [0, 0, 1, 1], [], []>} : vector<8x32xbf16>, vector<32x32xbf16>, vector<8x32xf32> -> vector<8x32xf32>
    %c0_28 = arith.constant 0 : index
    %c0_29 = arith.constant 0 : index
    %c0_30 = arith.constant 0 : index
    %95 = vector.load %arg8[%c0_28, %c0_29, %c0_30] : memref<1x1x32xf32, #tpu.memory_space<vmem>>, vector<1x1x32xf32>
    %96 = vector.shape_cast %95 : vector<1x1x32xf32> to vector<1x32xf32>
    %97 = vector.broadcast %96 : vector<1x32xf32> to vector<8x32xf32>
    %98 = arith.addf %94, %97 : vector<8x32xf32>
    %99 = vector.shape_cast %98 : vector<8x32xf32> to vector<1x8x32xf32>
    %100 = arith.addf %3, %99 : vector<1x8x32xf32>
    %c0_31 = arith.constant 0 : index
    %c0_32 = arith.constant 0 : index
    %c0_33 = arith.constant 0 : index
    %101 = vector.load %arg9[%c0_31, %c0_32, %c0_33] : memref<1x1x32xf32, #tpu.memory_space<vmem>>, vector<1x1x32xf32>
    %102 = vector.shape_cast %101 : vector<1x1x32xf32> to vector<1x32xf32>
    %c0_34 = arith.constant 0 : index
    %c0_35 = arith.constant 0 : index
    %c0_36 = arith.constant 0 : index
    %103 = vector.load %arg10[%c0_34, %c0_35, %c0_36] : memref<1x1x32xf32, #tpu.memory_space<vmem>>, vector<1x1x32xf32>
    %104 = vector.shape_cast %103 : vector<1x1x32xf32> to vector<1x32xf32>
    %cst_37 = arith.constant dense<0.000000e+00> : vector<1x8xf32>
    %105 = vector.multi_reduction <add>, %100, %cst_37 [2] : vector<1x8x32xf32> to vector<1x8xf32>
    %106 = vector.shape_cast %105 : vector<1x8xf32> to vector<1x8x1xf32>
    %cst_38 = arith.constant 3.200000e+01 : f32
    %107 = vector.broadcast %cst_38 : f32 to vector<1x8x1xf32>
    %108 = arith.divf %106, %107 : vector<1x8x1xf32>
    %109 = vector.broadcast %108 : vector<1x8x1xf32> to vector<1x8x32xf32>
    %110 = arith.subf %100, %109 : vector<1x8x32xf32>
    %111 = arith.mulf %110, %110 : vector<1x8x32xf32>
    %cst_39 = arith.constant dense<0.000000e+00> : vector<1x8xf32>
    %112 = vector.multi_reduction <add>, %111, %cst_39 [2] : vector<1x8x32xf32> to vector<1x8xf32>
    %113 = vector.shape_cast %112 : vector<1x8xf32> to vector<1x8x1xf32>
    %cst_40 = arith.constant 3.200000e+01 : f32
    %114 = vector.broadcast %cst_40 : f32 to vector<1x8x1xf32>
    %115 = arith.divf %113, %114 : vector<1x8x1xf32>
    %116 = vector.broadcast %108 : vector<1x8x1xf32> to vector<1x8x32xf32>
    %117 = arith.subf %100, %116 : vector<1x8x32xf32>
    %cst_41 = arith.constant 9.99999974E-6 : f32
    %118 = vector.broadcast %cst_41 : f32 to vector<1x8x1xf32>
    %119 = arith.addf %115, %118 : vector<1x8x1xf32>
    %120 = math.rsqrt %119 : vector<1x8x1xf32>
    %121 = vector.broadcast %120 : vector<1x8x1xf32> to vector<1x8x32xf32>
    %122 = arith.mulf %117, %121 : vector<1x8x32xf32>
    %123 = vector.shape_cast %102 : vector<1x32xf32> to vector<1x1x32xf32>
    %124 = vector.broadcast %123 : vector<1x1x32xf32> to vector<1x8x32xf32>
    %125 = arith.mulf %122, %124 : vector<1x8x32xf32>
    %126 = vector.shape_cast %104 : vector<1x32xf32> to vector<1x1x32xf32>
    %127 = vector.broadcast %126 : vector<1x1x32xf32> to vector<1x8x32xf32>
    %128 = arith.addf %125, %127 : vector<1x8x32xf32>
    %129 = vector.shape_cast %128 : vector<1x8x32xf32> to vector<8x32xf32>
    %130 = arith.truncf %129 : vector<8x32xf32> to vector<8x32xbf16>
    %c0_42 = arith.constant 0 : index
    %c0_43 = arith.constant 0 : index
    %c0_44 = arith.constant 0 : index
    %131 = vector.load %arg11[%c0_42, %c0_43, %c0_44] : memref<1x32x64xbf16, #tpu.memory_space<vmem>>, vector<1x32x64xbf16>
    %132 = vector.shape_cast %131 : vector<1x32x64xbf16> to vector<32x64xbf16>
    %cst_45 = arith.constant dense<0.000000e+00> : vector<8x64xf32>
    %133 = tpu.matmul %130, %132, %cst_45 {dimension_numbers = #tpu.dot_dimension_numbers<[1], [0], [0], [1], [0, 0, 1, 1], [], []>} : vector<8x32xbf16>, vector<32x64xbf16>, vector<8x64xf32> -> vector<8x64xf32>
    %c0_46 = arith.constant 0 : index
    %c0_47 = arith.constant 0 : index
    %c0_48 = arith.constant 0 : index
    %134 = vector.load %arg12[%c0_46, %c0_47, %c0_48] : memref<1x1x64xf32, #tpu.memory_space<vmem>>, vector<1x1x64xf32>
    %135 = vector.shape_cast %134 : vector<1x1x64xf32> to vector<1x64xf32>
    %136 = vector.broadcast %135 : vector<1x64xf32> to vector<8x64xf32>
    %137 = arith.addf %133, %136 : vector<8x64xf32>
    %cst_49 = arith.constant 5.000000e-01 : f32
    %138 = vector.broadcast %cst_49 : f32 to vector<8x64xf32>
    %139 = arith.mulf %138, %137 : vector<8x64xf32>
    %140 = arith.mulf %137, %137 : vector<8x64xf32>
    %141 = arith.mulf %140, %137 : vector<8x64xf32>
    %cst_50 = arith.constant 4.471500e-02 : f32
    %142 = vector.broadcast %cst_50 : f32 to vector<8x64xf32>
    %143 = arith.mulf %142, %141 : vector<8x64xf32>
    %144 = arith.addf %137, %143 : vector<8x64xf32>
    %cst_51 = arith.constant 0.797884583 : f32
    %145 = vector.broadcast %cst_51 : f32 to vector<8x64xf32>
    %146 = arith.mulf %145, %144 : vector<8x64xf32>
    %147 = math.tanh %146 : vector<8x64xf32>
    %cst_52 = arith.constant 1.000000e+00 : f32
    %148 = vector.broadcast %cst_52 : f32 to vector<8x64xf32>
    %149 = arith.addf %148, %147 : vector<8x64xf32>
    %150 = arith.mulf %139, %149 : vector<8x64xf32>
    %151 = arith.truncf %150 : vector<8x64xf32> to vector<8x64xbf16>
    %c0_53 = arith.constant 0 : index
    %c0_54 = arith.constant 0 : index
    %c0_55 = arith.constant 0 : index
    %152 = vector.load %arg13[%c0_53, %c0_54, %c0_55] : memref<1x64x32xbf16, #tpu.memory_space<vmem>>, vector<1x64x32xbf16>
    %153 = vector.shape_cast %152 : vector<1x64x32xbf16> to vector<64x32xbf16>
    %cst_56 = arith.constant dense<0.000000e+00> : vector<8x32xf32>
    %154 = tpu.matmul %151, %153, %cst_56 {dimension_numbers = #tpu.dot_dimension_numbers<[1], [0], [0], [1], [0, 0, 1, 1], [], []>} : vector<8x64xbf16>, vector<64x32xbf16>, vector<8x32xf32> -> vector<8x32xf32>
    %c0_57 = arith.constant 0 : index
    %c0_58 = arith.constant 0 : index
    %c0_59 = arith.constant 0 : index
    %155 = vector.load %arg14[%c0_57, %c0_58, %c0_59] : memref<1x1x32xf32, #tpu.memory_space<vmem>>, vector<1x1x32xf32>
    %156 = vector.shape_cast %155 : vector<1x1x32xf32> to vector<1x32xf32>
    %157 = vector.broadcast %156 : vector<1x32xf32> to vector<8x32xf32>
    %158 = arith.addf %154, %157 : vector<8x32xf32>
    %159 = vector.shape_cast %158 : vector<8x32xf32> to vector<1x8x32xf32>
    %160 = arith.addf %100, %159 : vector<1x8x32xf32>
    %c0_60 = arith.constant 0 : index
    %c0_61 = arith.constant 0 : index
    %c0_62 = arith.constant 0 : index
    %161 = vector.load %arg15[%c0_60, %c0_61, %c0_62] : memref<1x8x32xf32, #tpu.memory_space<vmem>>, vector<1x8x32xf32>
    tpu.vector_store %arg15[%c0_60, %c0_61, %c0_62], %160 {strides = array<i32>} : memref<1x8x32xf32, #tpu.memory_space<vmem>>, vector<1x8x32xf32>,
    return
  }
  func.func @transform_0(%arg0: i32, %arg1: i32) -> (i32, i32, i32) {
    %c0_i32 = arith.constant 0 : i32
    %c0_i32_0 = arith.constant 0 : i32
    %c0_i32_1 = arith.constant 0 : i32
    return %arg0, %c0_i32, %c0_i32_0 : i32, i32, i32
  }
  func.func @transform_1(%arg0: i32, %arg1: i32) -> (i32, i32, i32) {
    %c0_i32 = arith.constant 0 : i32
    %c0_i32_0 = arith.constant 0 : i32
    %c0_i32_1 = arith.constant 0 : i32
    return %arg1, %c0_i32, %c0_i32_0 : i32, i32, i32
  }
  func.func @transform_2(%arg0: i32, %arg1: i32) -> (i32, i32, i32) {
    %c0_i32 = arith.constant 0 : i32
    %c0_i32_0 = arith.constant 0 : i32
    %c0_i32_1 = arith.constant 0 : i32
    return %arg1, %c0_i32, %c0_i32_0 : i32, i32, i32
  }
  func.func @transform_3(%arg0: i32, %arg1: i32) -> (i32, i32, i32) {
    %c0_i32 = arith.constant 0 : i32
    %c0_i32_0 = arith.constant 0 : i32
    %c0_i32_1 = arith.constant 0 : i32
    return %arg1, %c0_i32, %c0_i32_0 : i32, i32, i32
  }
  func.func @transform_4(%arg0: i32, %arg1: i32) -> (i32, i32, i32) {
    %c0_i32 = arith.constant 0 : i32
    %c0_i32_0 = arith.constant 0 : i32
    %c0_i32_1 = arith.constant 0 : i32
    return %arg1, %c0_i32, %c0_i32_0 : i32, i32, i32
  }
  func.func @transform_5(%arg0: i32, %arg1: i32) -> (i32, i32, i32) {
    %c0_i32 = arith.constant 0 : i32
    %c0_i32_0 = arith.constant 0 : i32
    %c0_i32_1 = arith.constant 0 : i32
    return %arg1, %c0_i32, %c0_i32_0 : i32, i32, i32
  }
  func.func @transform_6(%arg0: i32, %arg1: i32) -> (i32, i32, i32) {
    %c0_i32 = arith.constant 0 : i32
    %c0_i32_0 = arith.constant 0 : i32
    %c0_i32_1 = arith.constant 0 : i32
    return %arg1, %c0_i32, %c0_i32_0 : i32, i32, i32
  }
  func.func @transform_7(%arg0: i32, %arg1: i32) -> (i32, i32, i32) {
    %c0_i32 = arith.constant 0 : i32
    %c0_i32_0 = arith.constant 0 : i32
    %c0_i32_1 = arith.constant 0 : i32
    return %arg1, %c0_i32, %c0_i32_0 : i32, i32, i32
  }
  func.func @transform_8(%arg0: i32, %arg1: i32) -> (i32, i32, i32) {
    %c0_i32 = arith.constant 0 : i32
    %c0_i32_0 = arith.constant 0 : i32
    %c0_i32_1 = arith.constant 0 : i32
    return %arg1, %c0_i32, %c0_i32_0 : i32, i32, i32
  }
  func.func @transform_9(%arg0: i32, %arg1: i32) -> (i32, i32, i32) {
    %c0_i32 = arith.constant 0 : i32
    %c0_i32_0 = arith.constant 0 : i32
    %c0_i32_1 = arith.constant 0 : i32
    return %arg1, %c0_i32, %c0_i32_0 : i32, i32, i32
  }
  func.func @transform_10(%arg0: i32, %arg1: i32) -> (i32, i32, i32) {
    %c0_i32 = arith.constant 0 : i32
    %c0_i32_0 = arith.constant 0 : i32
    %c0_i32_1 = arith.constant 0 : i32
    return %arg1, %c0_i32, %c0_i32_0 : i32, i32, i32
  }
  func.func @transform_11(%arg0: i32, %arg1: i32) -> (i32, i32, i32) {
    %c0_i32 = arith.constant 0 : i32
    %c0_i32_0 = arith.constant 0 : i32
    %c0_i32_1 = arith.constant 0 : i32
    return %arg1, %c0_i32, %c0_i32_0 : i32, i32, i32
  }
  func.func @transform_12(%arg0: i32, %arg1: i32) -> (i32, i32, i32) {
    %c0_i32 = arith.constant 0 : i32
    %c0_i32_0 = arith.constant 0 : i32
    %c0_i32_1 = arith.constant 0 : i32
    return %arg1, %c0_i32, %c0_i32_0 : i32, i32, i32
  }
  func.func @transform_13(%arg0: i32, %arg1: i32) -> (i32, i32, i32) {
    %c0_i32 = arith.constant 0 : i32
    %c0_i32_0 = arith.constant 0 : i32
    %c0_i32_1 = arith.constant 0 : i32
    return %arg0, %c0_i32, %c0_i32_0 : i32, i32, i32
  }
}

</mosaic_0001>

<llo_original>
// kernel: tpu_custom_call.1
$region0: #{tpu_custom_call.1}
  #allocation0 [shape = 'u32[]', space=smem, size = 0x4, offset = 0x4, fixed_abs, tag = 'smem constant byte address 0x4 - core index']
  #allocation1 [shape = 'u32[72,128]{1,0:T(1,128)}', space=vmem, size = 0x9000, scoped, tag = 'internal scratch']
  %s0 = inlined_call_operand.hbm [shape: f32[2,8,32], index: 0, kind: input, shape index: {}, may-alias: {0,13}]
  %s1 = inlined_call_operand.vmem [shape: f32[2,1,32], index: 1, kind: input, shape index: {}]
  %s2 = inlined_call_operand.vmem [shape: f32[2,1,32], index: 2, kind: input, shape index: {}]
  %s3 = inlined_call_operand.vmem [shape: bf16[2,32,96], index: 3, kind: input, shape index: {}]
  %s4 = inlined_call_operand.vmem [shape: f32[2,1,96], index: 4, kind: input, shape index: {}]
  %s5 = inlined_call_operand.vmem [shape: bf16[2,32,32], index: 5, kind: input, shape index: {}]
  %s6 = inlined_call_operand.vmem [shape: f32[2,1,32], index: 6, kind: input, shape index: {}]
  %s7 = inlined_call_operand.vmem [shape: f32[2,1,32], index: 7, kind: input, shape index: {}]
  %s8 = inlined_call_operand.hbm [shape: f32[2,1,32], index: 8, kind: input, shape index: {}]
  %s9 = inlined_call_operand.vmem [shape: bf16[2,32,64], index: 9, kind: input, shape index: {}]
  %s10 = inlined_call_operand.hbm [shape: f32[2,1,64], index: 10, kind: input, shape index: {}]
  %s11 = inlined_call_operand.vmem [shape: bf16[2,64,32], index: 11, kind: input, shape index: {}]
  %s12 = inlined_call_operand.hbm [shape: f32[2,1,32], index: 12, kind: input, shape index: {}]
  %s13 = inlined_call_operand.hbm [shape: f32[2,8,32], index: 13, kind: output, shape index: {}, may-alias: {0,13}]
  %s14 = sld [smem:[#allocation0]]
  $region105: #{tpu_custom_call.1} parent=0
    _
  %s16 = ssub.s32 1, %s14
  %s17 = scalar_select 0, %s16, %s14
  $region1: #{tpu_custom_call.1} parent=0
    #allocation2 [shape = 'u8[8192]{0}', space=vmem, size = 0x2000, scoped, tag = 'input window, operand 0']
    #allocation3 [shape = 's32[2]{0}', space=sflag, size = 0x8, scoped, tag = 'scoped memory for tpu_custom_call.1']
    #allocation4 [shape = 's32[2]{0}', space=sflag, size = 0x8, scoped, tag = 'scoped memory for tpu_custom_call.1']
    #allocation5 [shape = 'u8[1024]{0}', space=vmem, size = 0x400, scoped, tag = 'input window, operand 8']
    #allocation6 [shape = 's32[2]{0}', space=sflag, size = 0x8, scoped, tag = 'scoped memory for tpu_custom_call.1']
    #allocation7 [shape = 'u8[1024]{0}', space=vmem, size = 0x400, scoped, tag = 'input window, operand 10']
    #allocation8 [shape = 'u8[1024]{0}', space=vmem, size = 0x400, scoped, tag = 'input window, operand 12']
    #allocation9 [shape = 's32[2]{0}', space=sflag, size = 0x8, scoped, tag = 'scoped memory for tpu_custom_call.1']
    #allocation10 [shape = 'u8[8192]{0}', space=vmem, size = 0x2000, scoped, tag = 'output window, operand 0']
    %18 = vsyncpa [#allocation3], 0
    %s19 = scalar_lea.sflag [#allocation3], 1
    %20 = vsyncpa %s19, 0
    %21 = vsyncpa [#allocation6], 0
    %s22 = scalar_lea.sflag [#allocation6], 1
    %23 = vsyncpa %s22, 0
    %24 = vsyncpa [#allocation9], 0
    %s25 = scalar_lea.sflag [#allocation9], 1
    %26 = vsyncpa %s25, 0
    %27 = vsyncpa [#allocation4], 0
    %s28 = scalar_lea.sflag [#allocation4], 1
    %29 = vsyncpa %s28, 0
    loop: start=0, step=1, limit=6
    $region2: #{tpu_custom_call.1} parent=1 // loop_pre_header
      _
    $region3: #{tpu_custom_call.1} parent=1 // loop_header
      %s31 = sphi 0, %s35
      %p32 = scmp.ge.s32.totalorder %s31, 6
      %s38 = sphi 0, %s50
      %s39 = sphi 0, %s46
      %s40 = sphi 0, %s38
      %s41 = sphi 0, %s39
      %s42 = sphi 0, %s40
      %s43 = sphi 0, %s41
      %s53 = sphi 0, %s55
      %s56 = sphi 0, %s53
      %s57 = sphi 0, %s56
      %s73 = sphi 0, %s57
      %s79 = sphi 0, %s81
      %s82 = sphi 0, %s79
      %s83 = sphi 0, %s82
      %s99 = sphi 0, %s83
      %s105 = sphi 0, %s107
      %s108 = sphi 0, %s105
      %s109 = sphi 0, %s108
      %s125 = sphi 0, %s109
      %s131 = sphi 0, %s133
      %s134 = sphi 0, %s131
      %s135 = sphi 0, %s134
      %s151 = sphi 0, %s135
      %s157 = sphi 0, %s159
      %s160 = sphi 0, %s157
      %s161 = sphi 0, %s160
      %s177 = sphi 0, %s161
      %s183 = sphi 0, %s185
      %s186 = sphi 0, %s183
      %s187 = sphi 0, %s186
      %s203 = sphi 0, %s187
      %s209 = sphi 0, %s211
      %s212 = sphi 0, %s209
      %s213 = sphi 0, %s212
      %s229 = sphi 0, %s213
      %s235 = sphi 0, %s237
      %s238 = sphi 0, %s235
      %s239 = sphi 0, %s238
      %s255 = sphi 0, %s239
      %s261 = sphi 0, %s263
      %s264 = sphi 0, %s261
      %s265 = sphi 0, %s264
      %s281 = sphi 0, %s265
      %s287 = sphi 0, %s289
      %s290 = sphi 0, %s287
      %s291 = sphi 0, %s290
      %s307 = sphi 0, %s291
      %s313 = sphi 0, %s315
      %s316 = sphi 0, %s313
      %s317 = sphi 0, %s316
      %s333 = sphi 0, %s317
      %s339 = sphi 0, %s341
      %s342 = sphi 0, %s339
      %s343 = sphi 0, %s342
      %s359 = sphi 0, %s343
      %s365 = sphi 0, %s367
      %s368 = sphi 0, %s365
      %s369 = sphi 0, %s368
      %s385 = sphi 0, %s369
      %s391 = sphi 0, %s393
      %s394 = sphi 0, %s391
      %s395 = sphi 0, %s394
      %s411 = sphi 0, %s395
    $region4: #{tpu_custom_call.1} parent=1 // loop_header_branch
      %34 = sbr.rel (%p32) target = $region8
    $region5: #{tpu_custom_call.1} parent=1 // loop_body
      %s36 = ssub.s32 %s31, 1
      %s37 = ssub.s32 %s31, 2
      %s44 = sadd.s32 1, %s39
      %p45 = scmp.ge.s32.totalorder %s44, 2
      %s46 = scalar_select %p45, 0, %s44
      %s47 = sadd.s32 1, %s38
      %s48 = scalar_select %p45, %s47, %s38
      %p49 = scmp.ge.s32.totalorder %s48, 2
      %s50 = scalar_select %p49, 0, %s48
      %s51 = ssub.s32 %s38, %s50
      %p52 = scmp.eq.s32.totalorder %s51, 0
      %s54 = sadd.s32 %s53, 1
      %s55 = scalar_select %p52, %s53, %s54
      %p58 = pneg %p52
      %p59 = scmp.eq.s32.totalorder %s31, 3
      %p60 = por %p58, %p59
      %p61 = scmp.ne.s32.totalorder %s53, %s56
      %p62 = scmp.eq.s32.totalorder %s31, 0
      %p63 = por %p61, %p62
      %p64 = scmp.ne.s32.totalorder %s53, %s56
      %p65 = scmp.eq.s32.totalorder %s36, 3
      %p66 = por %p64, %p65
      %p67 = scmp.ne.s32.totalorder %s56, %s57
      %p68 = scmp.eq.s32.totalorder %s36, 0
      %p69 = por %p67, %p68
      %p70 = scmp.ne.s32.totalorder %s56, %s57
      %p71 = scmp.eq.s32.totalorder %s37, 3
      %p72 = por %p70, %p71
      %p74 = scmp.ne.s32.totalorder %s57, %s73
      %p75 = scmp.eq.s32.totalorder %s37, 0
      %p76 = por %p74, %p75
      %s77 = ssub.s32 %s39, %s46
      %p78 = scmp.eq.s32.totalorder %s77, 0
      %s80 = sadd.s32 %s79, 1
      %s81 = scalar_select %p78, %s79, %s80
      %p84 = pneg %p78
      %p85 = scmp.eq.s32.totalorder %s31, 3
      %p86 = por %p84, %p85
      %p87 = scmp.ne.s32.totalorder %s79, %s82
      %p88 = scmp.eq.s32.totalorder %s31, 0
      %p89 = por %p87, %p88
      %p90 = scmp.ne.s32.totalorder %s79, %s82
      %p91 = scmp.eq.s32.totalorder %s36, 3
      %p92 = por %p90, %p91
      %p93 = scmp.ne.s32.totalorder %s82, %s83
      %p94 = scmp.eq.s32.totalorder %s36, 0
      %p95 = por %p93, %p94
      %p96 = scmp.ne.s32.totalorder %s82, %s83
      %p97 = scmp.eq.s32.totalorder %s37, 3
      %p98 = por %p96, %p97
      %p100 = scmp.ne.s32.totalorder %s83, %s99
      %p101 = scmp.eq.s32.totalorder %s37, 0
      %p102 = por %p100, %p101
      %s103 = ssub.s32 %s39, %s46
      %p104 = scmp.eq.s32.totalorder %s103, 0
      %s106 = sadd.s32 %s105, 1
      %s107 = scalar_select %p104, %s105, %s106
      %p110 = pneg %p104
      %p111 = scmp.eq.s32.totalorder %s31, 3
      %p112 = por %p110, %p111
      %p113 = scmp.ne.s32.totalorder %s105, %s108
      %p114 = scmp.eq.s32.totalorder %s31, 0
      %p115 = por %p113, %p114
      %p116 = scmp.ne.s32.totalorder %s105, %s108
      %p117 = scmp.eq.s32.totalorder %s36, 3
      %p118 = por %p116, %p117
      %p119 = scmp.ne.s32.totalorder %s108, %s109
      %p120 = scmp.eq.s32.totalorder %s36, 0
      %p121 = por %p119, %p120
      %p122 = scmp.ne.s32.totalorder %s108, %s109
      %p123 = scmp.eq.s32.totalorder %s37, 3
      %p124 = por %p122, %p123
      %p126 = scmp.ne.s32.totalorder %s109, %s125
      %p127 = scmp.eq.s32.totalorder %s37, 0
      %p128 = por %p126, %p127
      %s129 = ssub.s32 %s39, %s46
      %p130 = scmp.eq.s32.totalorder %s129, 0
      %s132 = sadd.s32 %s131, 1
      %s133 = scalar_select %p130, %s131, %s132
      %p136 = pneg %p130
      %p137 = scmp.eq.s32.totalorder %s31, 3
      %p138 = por %p136, %p137
      %p139 = scmp.ne.s32.totalorder %s131, %s134
      %p140 = scmp.eq.s32.totalorder %s31, 0
      %p141 = por %p139, %p140
      %p142 = scmp.ne.s32.totalorder %s131, %s134
      %p143 = scmp.eq.s32.totalorder %s36, 3
      %p144 = por %p142, %p143
      %p145 = scmp.ne.s32.totalorder %s134, %s135
      %p146 = scmp.eq.s32.totalorder %s36, 0
      %p147 = por %p145, %p146
      %p148 = scmp.ne.s32.totalorder %s134, %s135
      %p149 = scmp.eq.s32.totalorder %s37, 3
      %p150 = por %p148, %p149
      %p152 = scmp.ne.s32.totalorder %s135, %s151
      %p153 = scmp.eq.s32.totalorder %s37, 0
      %p154 = por %p152, %p153
      %s155 = ssub.s32 %s39, %s46
      %p156 = scmp.eq.s32.totalorder %s155, 0
      %s158 = sadd.s32 %s157, 1
      %s159 = scalar_select %p156, %s157, %s158
      %p162 = pneg %p156
      %p163 = scmp.eq.s32.totalorder %s31, 3
      %p164 = por %p162, %p163
      %p165 = scmp.ne.s32.totalorder %s157, %s160
      %p166 = scmp.eq.s32.totalorder %s31, 0
      %p167 = por %p165, %p166
      %p168 = scmp.ne.s32.totalorder %s157, %s160
      %p169 = scmp.eq.s32.totalorder %s36, 3
      %p170 = por %p168, %p169
      %p171 = scmp.ne.s32.totalorder %s160, %s161
      %p172 = scmp.eq.s32.totalorder %s36, 0
      %p173 = por %p171, %p172
      %p174 = scmp.ne.s32.totalorder %s160, %s161
      %p175 = scmp.eq.s32.totalorder %s37, 3
      %p176 = por %p174, %p175
      %p178 = scmp.ne.s32.totalorder %s161, %s177
      %p179 = scmp.eq.s32.totalorder %s37, 0
      %p180 = por %p178, %p179
      %s181 = ssub.s32 %s39, %s46
      %p182 = scmp.eq.s32.totalorder %s181, 0
      %s184 = sadd.s32 %s183, 1
      %s185 = scalar_select %p182, %s183, %s184
      %p188 = pneg %p182
      %p189 = scmp.eq.s32.totalorder %s31, 3
      %p190 = por %p188, %p189
      %p191 = scmp.ne.s32.totalorder %s183, %s186
      %p192 = scmp.eq.s32.totalorder %s31, 0
      %p193 = por %p191, %p192
      %p194 = scmp.ne.s32.totalorder %s183, %s186
      %p195 = scmp.eq.s32.totalorder %s36, 3
      %p196 = por %p194, %p195
      %p197 = scmp.ne.s32.totalorder %s186, %s187
      %p198 = scmp.eq.s32.totalorder %s36, 0
      %p199 = por %p197, %p198
      %p200 = scmp.ne.s32.totalorder %s186, %s187
      %p201 = scmp.eq.s32.totalorder %s37, 3
      %p202 = por %p200, %p201
      %p204 = scmp.ne.s32.totalorder %s187, %s203
      %p205 = scmp.eq.s32.totalorder %s37, 0
      %p206 = por %p204, %p205
      %s207 = ssub.s32 %s39, %s46
      %p208 = scmp.eq.s32.totalorder %s207, 0
      %s210 = sadd.s32 %s209, 1
      %s211 = scalar_select %p208, %s209, %s210
      %p214 = pneg %p208
      %p215 = scmp.eq.s32.totalorder %s31, 3
      %p216 = por %p214, %p215
      %p217 = scmp.ne.s32.totalorder %s209, %s212
      %p218 = scmp.eq.s32.totalorder %s31, 0
      %p219 = por %p217, %p218
      %p220 = scmp.ne.s32.totalorder %s209, %s212
      %p221 = scmp.eq.s32.totalorder %s36, 3
      %p222 = por %p220, %p221
      %p223 = scmp.ne.s32.totalorder %s212, %s213
      %p224 = scmp.eq.s32.totalorder %s36, 0
      %p225 = por %p223, %p224
      %p226 = scmp.ne.s32.totalorder %s212, %s213
      %p227 = scmp.eq.s32.totalorder %s37, 3
      %p228 = por %p226, %p227
      %p230 = scmp.ne.s32.totalorder %s213, %s229
      %p231 = scmp.eq.s32.totalorder %s37, 0
      %p232 = por %p230, %p231
      %s233 = ssub.s32 %s39, %s46
      %p234 = scmp.eq.s32.totalorder %s233, 0
      %s236 = sadd.s32 %s235, 1
      %s237 = scalar_select %p234, %s235, %s236
      %p240 = pneg %p234
      %p241 = scmp.eq.s32.totalorder %s31, 3
      %p242 = por %p240, %p241
      %p243 = scmp.ne.s32.totalorder %s235, %s238
      %p244 = scmp.eq.s32.totalorder %s31, 0
      %p245 = por %p243, %p244
      %p246 = scmp.ne.s32.totalorder %s235, %s238
      %p247 = scmp.eq.s32.totalorder %s36, 3
      %p248 = por %p246, %p247
      %p249 = scmp.ne.s32.totalorder %s238, %s239
      %p250 = scmp.eq.s32.totalorder %s36, 0
      %p251 = por %p249, %p250
      %p252 = scmp.ne.s32.totalorder %s238, %s239
      %p253 = scmp.eq.s32.totalorder %s37, 3
      %p254 = por %p252, %p253
      %p256 = scmp.ne.s32.totalorder %s239, %s255
      %p257 = scmp.eq.s32.totalorder %s37, 0
      %p258 = por %p256, %p257
      %s259 = ssub.s32 %s39, %s46
      %p260 = scmp.eq.s32.totalorder %s259, 0
      %s262 = sadd.s32 %s261, 1
      %s263 = scalar_select %p260, %s261, %s262
      %p266 = pneg %p260
      %p267 = scmp.eq.s32.totalorder %s31, 3
      %p268 = por %p266, %p267
      %p269 = scmp.ne.s32.totalorder %s261, %s264
      %p270 = scmp.eq.s32.totalorder %s31, 0
      %p271 = por %p269, %p270
      %p272 = scmp.ne.s32.totalorder %s261, %s264
      %p273 = scmp.eq.s32.totalorder %s36, 3
      %p274 = por %p272, %p273
      %p275 = scmp.ne.s32.totalorder %s264, %s265
      %p276 = scmp.eq.s32.totalorder %s36, 0
      %p277 = por %p275, %p276
      %p278 = scmp.ne.s32.totalorder %s264, %s265
      %p279 = scmp.eq.s32.totalorder %s37, 3
      %p280 = por %p278, %p279
      %p282 = scmp.ne.s32.totalorder %s265, %s281
      %p283 = scmp.eq.s32.totalorder %s37, 0
      %p284 = por %p282, %p283
      %s285 = ssub.s32 %s39, %s46
      %p286 = scmp.eq.s32.totalorder %s285, 0
      %s288 = sadd.s32 %s287, 1
      %s289 = scalar_select %p286, %s287, %s288
      %p292 = pneg %p286
      %p293 = scmp.eq.s32.totalorder %s31, 3
      %p294 = por %p292, %p293
      %p295 = scmp.ne.s32.totalorder %s287, %s290
      %p296 = scmp.eq.s32.totalorder %s31, 0
      %p297 = por %p295, %p296
      %p298 = scmp.ne.s32.totalorder %s287, %s290
      %p299 = scmp.eq.s32.totalorder %s36, 3
      %p300 = por %p298, %p299
      %p301 = scmp.ne.s32.totalorder %s290, %s291
      %p302 = scmp.eq.s32.totalorder %s36, 0
      %p303 = por %p301, %p302
      %p304 = scmp.ne.s32.totalorder %s290, %s291
      %p305 = scmp.eq.s32.totalorder %s37, 3
      %p306 = por %p304, %p305
      %p308 = scmp.ne.s32.totalorder %s291, %s307
      %p309 = scmp.eq.s32.totalorder %s37, 0
      %p310 = por %p308, %p309
      %s311 = ssub.s32 %s39, %s46
      %p312 = scmp.eq.s32.totalorder %s311, 0
      %s314 = sadd.s32 %s313, 1
      %s315 = scalar_select %p312, %s313, %s314
      %p318 = pneg %p312
      %p319 = scmp.eq.s32.totalorder %s31, 3
      %p320 = por %p318, %p319
      %p321 = scmp.ne.s32.totalorder %s313, %s316
      %p322 = scmp.eq.s32.totalorder %s31, 0
      %p323 = por %p321, %p322
      %p324 = scmp.ne.s32.totalorder %s313, %s316
      %p325 = scmp.eq.s32.totalorder %s36, 3
      %p326 = por %p324, %p325
      %p327 = scmp.ne.s32.totalorder %s316, %s317
      %p328 = scmp.eq.s32.totalorder %s36, 0
      %p329 = por %p327, %p328
      %p330 = scmp.ne.s32.totalorder %s316, %s317
      %p331 = scmp.eq.s32.totalorder %s37, 3
      %p332 = por %p330, %p331
      %p334 = scmp.ne.s32.totalorder %s317, %s333
      %p335 = scmp.eq.s32.totalorder %s37, 0
      %p336 = por %p334, %p335
      %s337 = ssub.s32 %s39, %s46
      %p338 = scmp.eq.s32.totalorder %s337, 0
      %s340 = sadd.s32 %s339, 1
      %s341 = scalar_select %p338, %s339, %s340
      %p344 = pneg %p338
      %p345 = scmp.eq.s32.totalorder %s31, 3
      %p346 = por %p344, %p345
      %p347 = scmp.ne.s32.totalorder %s339, %s342
      %p348 = scmp.eq.s32.totalorder %s31, 0
      %p349 = por %p347, %p348
      %p350 = scmp.ne.s32.totalorder %s339, %s342
      %p351 = scmp.eq.s32.totalorder %s36, 3
      %p352 = por %p350, %p351
      %p353 = scmp.ne.s32.totalorder %s342, %s343
      %p354 = scmp.eq.s32.totalorder %s36, 0
      %p355 = por %p353, %p354
      %p356 = scmp.ne.s32.totalorder %s342, %s343
      %p357 = scmp.eq.s32.totalorder %s37, 3
      %p358 = por %p356, %p357
      %p360 = scmp.ne.s32.totalorder %s343, %s359
      %p361 = scmp.eq.s32.totalorder %s37, 0
      %p362 = por %p360, %p361
      %s363 = ssub.s32 %s39, %s46
      %p364 = scmp.eq.s32.totalorder %s363, 0
      %s366 = sadd.s32 %s365, 1
      %s367 = scalar_select %p364, %s365, %s366
      %p370 = pneg %p364
      %p371 = scmp.eq.s32.totalorder %s31, 3
      %p372 = por %p370, %p371
      %p373 = scmp.ne.s32.totalorder %s365, %s368
      %p374 = scmp.eq.s32.totalorder %s31, 0
      %p375 = por %p373, %p374
      %p376 = scmp.ne.s32.totalorder %s365, %s368
      %p377 = scmp.eq.s32.totalorder %s36, 3
      %p378 = por %p376, %p377
      %p379 = scmp.ne.s32.totalorder %s368, %s369
      %p380 = scmp.eq.s32.totalorder %s36, 0
      %p381 = por %p379, %p380
      %p382 = scmp.ne.s32.totalorder %s368, %s369
      %p383 = scmp.eq.s32.totalorder %s37, 3
      %p384 = por %p382, %p383
      %p386 = scmp.ne.s32.totalorder %s369, %s385
      %p387 = scmp.eq.s32.totalorder %s37, 0
      %p388 = por %p386, %p387
      %s389 = ssub.s32 %s38, %s50
      %p390 = scmp.eq.s32.totalorder %s389, 0
      %s392 = sadd.s32 %s391, 1
      %s393 = scalar_select %p390, %s391, %s392
      %p396 = pneg %p390
      %p397 = scmp.eq.s32.totalorder %s31, 3
      %p398 = por %p396, %p397
      %p399 = scmp.ne.s32.totalorder %s391, %s394
      %p400 = scmp.eq.s32.totalorder %s31, 0
      %p401 = por %p399, %p400
      %p402 = scmp.ne.s32.totalorder %s391, %s394
      %p403 = scmp.eq.s32.totalorder %s36, 3
      %p404 = por %p402, %p403
      %p405 = scmp.ne.s32.totalorder %s394, %s395
      %p406 = scmp.eq.s32.totalorder %s36, 0
      %p407 = por %p405, %p406
      %p408 = scmp.ne.s32.totalorder %s394, %s395
      %p409 = scmp.eq.s32.totalorder %s37, 3
      %p410 = por %p408, %p409
      %p412 = scmp.ne.s32.totalorder %s395, %s411
      %p413 = scmp.eq.s32.totalorder %s37, 0
      %p414 = por %p412, %p413
      %p415 = scmp.le.s32.totalorder 1, %s31
      %p416 = scmp.lt.s32.totalorder %s31, 5
      %p417 = pnand %p415, %p416
      %p418 = pneg %p417
      // Predicated region
      $region9: #{tpu_custom_call.1} parent=5 // pred_check
        _
      $region10: #{tpu_custom_call.1} parent=5 // pred_check_branch
        %420 = sbr.rel (%p417) target = $region12
      $region11: #{tpu_custom_call.1} parent=5 // pred_region
        %s421 = ssub.s32 %s31, 1
      $region12: #{tpu_custom_call.1} parent=5 // pred_fallthru
        _
      %p422 = scmp.lt.s32.totalorder %s31, 4
      // Predicated region
      $region13: #{tpu_custom_call.1} parent=5 // pred_check
        %p423 = pneg %p422
      $region14: #{tpu_custom_call.1} parent=5 // pred_check_branch
        %425 = sbr.rel (%p423) target = $region16
      $region15: #{tpu_custom_call.1} parent=5 // pred_region
        // Predicated region
        $region17: #{tpu_custom_call.1} parent=15 // pred_check
          %p426 = pneg %p63
        $region18: #{tpu_custom_call.1} parent=15 // pred_check_branch
          %428 = sbr.rel (%p426) target = $region20
        $region19: #{tpu_custom_call.1} parent=15 // pred_region
          %s429 = sand.u32 %s53, 1
          %s430 = scalar_lea.sflag [#allocation3], %s429
          %s431 = sand.u32 %s53, 1
          %s432 = smul.addr %s431, 8
          %s433 = scalar_lea.vmem [#allocation2], %s432
          %435 = vsyncadd %s430, 0
          %s436 = smul.addr %s38, 8
          %s437 = scalar_lea.hbm %s0, %s436
          %s439 = sshll.u32 %s437, 4
          %s440 = int_to_ptr.hbm [resolvable:$true] %s439
          %s441 = sshll.u32 %s433, 4
          %s442 = int_to_ptr.vmem [resolvable:$true] %s441
          %444 = dma.hbm_to_vmem [thread:$0]  %s440, 128, %s442, %s430
        $region20: #{tpu_custom_call.1} parent=15 // pred_fallthru
          _
        // Predicated region
        $region21: #{tpu_custom_call.1} parent=15 // pred_check
          %p445 = pneg %p89
        $region22: #{tpu_custom_call.1} parent=15 // pred_check_branch
          %447 = sbr.rel (%p445) target = $region24
        $region23: #{tpu_custom_call.1} parent=15 // pred_region
          %p448 = scmp.lt.s32.totalorder %s39, 1
          %s449 = scalar_select %p448, %s39, 1
          %s450 = scalar_lea.vmem %s1, %s449
        $region24: #{tpu_custom_call.1} parent=15 // pred_fallthru
          _
        // Predicated region
        $region25: #{tpu_custom_call.1} parent=15 // pred_check
          %p451 = pneg %p115
        $region26: #{tpu_custom_call.1} parent=15 // pred_check_branch
          %453 = sbr.rel (%p451) target = $region28
        $region27: #{tpu_custom_call.1} parent=15 // pred_region
          %p454 = scmp.lt.s32.totalorder %s39, 1
          %s455 = scalar_select %p454, %s39, 1
          %s456 = scalar_lea.vmem %s2, %s455
        $region28: #{tpu_custom_call.1} parent=15 // pred_fallthru
          _
        // Predicated region
        $region29: #{tpu_custom_call.1} parent=15 // pred_check
          %p457 = pneg %p141
        $region30: #{tpu_custom_call.1} parent=15 // pred_check_branch
          %459 = sbr.rel (%p457) target = $region32
        $region31: #{tpu_custom_call.1} parent=15 // pred_region
          %p460 = scmp.lt.s32.totalorder %s39, 1
          %s461 = scalar_select %p460, %s39, 1
          %s462 = smul.addr %s461, 4
          %s463 = smul.addr %s462, 4
          %s464 = scalar_lea.vmem %s3, %s463
        $region32: #{tpu_custom_call.1} parent=15 // pred_fallthru
          _
        // Predicated region
        $region33: #{tpu_custom_call.1} parent=15 // pred_check
          %p465 = pneg %p167
        $region34: #{tpu_custom_call.1} parent=15 // pred_check_branch
          %467 = sbr.rel (%p465) target = $region36
        $region35: #{tpu_custom_call.1} parent=15 // pred_region
          %p468 = scmp.lt.s32.totalorder %s39, 1
          %s469 = scalar_select %p468, %s39, 1
          %s470 = scalar_lea.vmem %s4, %s469
        $region36: #{tpu_custom_call.1} parent=15 // pred_fallthru
          _
        // Predicated region
        $region37: #{tpu_custom_call.1} parent=15 // pred_check
          %p471 = pneg %p193
        $region38: #{tpu_custom_call.1} parent=15 // pred_check_branch
          %473 = sbr.rel (%p471) target = $region40
        $region39: #{tpu_custom_call.1} parent=15 // pred_region
          %p474 = scmp.lt.s32.totalorder %s39, 1
          %s475 = scalar_select %p474, %s39, 1
          %s476 = smul.addr %s475, 4
          %s477 = smul.addr %s476, 4
          %s478 = scalar_lea.vmem %s5, %s477
        $region40: #{tpu_custom_call.1} parent=15 // pred_fallthru
          _
        // Predicated region
        $region41: #{tpu_custom_call.1} parent=15 // pred_check
          %p479 = pneg %p219
        $region42: #{tpu_custom_call.1} parent=15 // pred_check_branch
          %481 = sbr.rel (%p479) target = $region44
        $region43: #{tpu_custom_call.1} parent=15 // pred_region
          %p482 = scmp.lt.s32.totalorder %s39, 1
          %s483 = scalar_select %p482, %s39, 1
          %s484 = scalar_lea.vmem %s6, %s483
        $region44: #{tpu_custom_call.1} parent=15 // pred_fallthru
          _
        // Predicated region
        $region45: #{tpu_custom_call.1} parent=15 // pred_check
          %p485 = pneg %p245
        $region46: #{tpu_custom_call.1} parent=15 // pred_check_branch
          %487 = sbr.rel (%p485) target = $region48
        $region47: #{tpu_custom_call.1} parent=15 // pred_region
          %p488 = scmp.lt.s32.totalorder %s39, 1
          %s489 = scalar_select %p488, %s39, 1
          %s490 = scalar_lea.vmem %s7, %s489
        $region48: #{tpu_custom_call.1} parent=15 // pred_fallthru
          _
        // Predicated region
        $region49: #{tpu_custom_call.1} parent=15 // pred_check
          %p491 = pneg %p271
        $region50: #{tpu_custom_call.1} parent=15 // pred_check_branch
          %493 = sbr.rel (%p491) target = $region52
        $region51: #{tpu_custom_call.1} parent=15 // pred_region
          %s494 = sand.u32 %s31, 1
          %s495 = scalar_lea.sflag [#allocation6], %s494
          %s496 = sand.u32 %s261, 1
          %s497 = scalar_lea.vmem [#allocation5], %s496
          %499 = vsyncadd %s495, 0
          %s500 = scalar_lea.hbm %s8, %s39
          %s502 = sshll.u32 %s500, 4
          %s503 = int_to_ptr.hbm [resolvable:$true] %s502
          %s504 = sshll.u32 %s497, 4
          %s505 = int_to_ptr.vmem [resolvable:$true] %s504
          %507 = dma.hbm_to_vmem [thread:$0]  %s503, 16, %s505, %s495
        $region52: #{tpu_custom_call.1} parent=15 // pred_fallthru
          _
        // Predicated region
        $region53: #{tpu_custom_call.1} parent=15 // pred_check
          %p508 = pneg %p297
        $region54: #{tpu_custom_call.1} parent=15 // pred_check_branch
          %510 = sbr.rel (%p508) target = $region56
        $region55: #{tpu_custom_call.1} parent=15 // pred_region
          %p511 = scmp.lt.s32.totalorder %s39, 1
          %s512 = scalar_select %p511, %s39, 1
          %s513 = smul.addr %s512, 4
          %s514 = smul.addr %s513, 4
          %s515 = scalar_lea.vmem %s9, %s514
        $region56: #{tpu_custom_call.1} parent=15 // pred_fallthru
          _
        // Predicated region
        $region57: #{tpu_custom_call.1} parent=15 // pred_check
          %p516 = pneg %p323
        $region58: #{tpu_custom_call.1} parent=15 // pred_check_branch
          %518 = sbr.rel (%p516) target = $region60
        $region59: #{tpu_custom_call.1} parent=15 // pred_region
          %s519 = sand.u32 %s31, 1
          %s520 = scalar_lea.sflag [#allocation6], %s519
          %s521 = sand.u32 %s313, 1
          %s522 = scalar_lea.vmem [#allocation7], %s521
          %524 = vsyncadd %s520, 0
          %s525 = scalar_lea.hbm %s10, %s39
          %s527 = sshll.u32 %s525, 4
          %s528 = int_to_ptr.hbm [resolvable:$true] %s527
          %s529 = sshll.u32 %s522, 4
          %s530 = int_to_ptr.vmem [resolvable:$true] %s529
          %532 = dma.hbm_to_vmem [thread:$0]  %s528, 16, %s530, %s520
        $region60: #{tpu_custom_call.1} parent=15 // pred_fallthru
          _
        // Predicated region
        $region61: #{tpu_custom_call.1} parent=15 // pred_check
          %p533 = pneg %p349
        $region62: #{tpu_custom_call.1} parent=15 // pred_check_branch
          %535 = sbr.rel (%p533) target = $region64
        $region63: #{tpu_custom_call.1} parent=15 // pred_region
          %p536 = scmp.lt.s32.totalorder %s39, 1
          %s537 = scalar_select %p536, %s39, 1
          %s538 = smul.addr %s537, 8
          %s539 = smul.addr %s538, 4
          %s540 = scalar_lea.vmem %s11, %s539
        $region64: #{tpu_custom_call.1} parent=15 // pred_fallthru
          _
        // Predicated region
        $region65: #{tpu_custom_call.1} parent=15 // pred_check
          %p541 = pneg %p375
        $region66: #{tpu_custom_call.1} parent=15 // pred_check_branch
          %543 = sbr.rel (%p541) target = $region68
        $region67: #{tpu_custom_call.1} parent=15 // pred_region
          %s544 = sand.u32 %s365, 1
          %s545 = scalar_lea.sflag [#allocation9], %s544
          %s546 = sand.u32 %s365, 1
          %s547 = scalar_lea.vmem [#allocation8], %s546
          %549 = vsyncadd %s545, 0
          %s550 = scalar_lea.hbm %s12, %s39
          %s552 = sshll.u32 %s550, 4
          %s553 = int_to_ptr.hbm [resolvable:$true] %s552
          %s554 = sshll.u32 %s547, 4
          %s555 = int_to_ptr.vmem [resolvable:$true] %s554
          %557 = dma.hbm_to_vmem [thread:$0]  %s553, 16, %s555, %s545
        $region68: #{tpu_custom_call.1} parent=15 // pred_fallthru
          _
      $region16: #{tpu_custom_call.1} parent=5 // pred_fallthru
        _
      %p558 = scmp.le.s32.totalorder 1, %s31
      %p559 = scmp.lt.s32.totalorder %s31, 5
      %p560 = pnand %p558, %p559
      %p561 = pneg %p560
      // Predicated region
      $region69: #{tpu_custom_call.1} parent=5 // pred_check
        _
      $region70: #{tpu_custom_call.1} parent=5 // pred_check_branch
        %563 = sbr.rel (%p560) target = $region72
      $region71: #{tpu_custom_call.1} parent=5 // pred_region
        %s564 = ssub.s32 %s31, 1
        %s565 = sand.u32 %s56, 1
        %s566 = scalar_lea.sflag [#allocation3], %s565
        %s567 = sand.u32 %s56, 1
        %s568 = smul.addr %s567, 8
        %s569 = scalar_lea.vmem [#allocation2], %s568
        // Predicated region
        $region73: #{tpu_custom_call.1} parent=71 // pred_check
          %p570 = pneg %p69
        $region74: #{tpu_custom_call.1} parent=71 // pred_check_branch
          %572 = sbr.rel (%p570) target = $region76
        $region75: #{tpu_custom_call.1} parent=71 // pred_region
          %574 = dma.done %s566, 128
        $region76: #{tpu_custom_call.1} parent=71 // pred_fallthru
          _
        %s575 = sand.u32 %s36, 1
        %s576 = scalar_lea.sflag [#allocation6], %s575
        %s577 = sand.u32 %s264, 1
        %s578 = scalar_lea.vmem [#allocation5], %s577
        // Predicated region
        $region77: #{tpu_custom_call.1} parent=71 // pred_check
          %p579 = pneg %p277
        $region78: #{tpu_custom_call.1} parent=71 // pred_check_branch
          %581 = sbr.rel (%p579) target = $region80
        $region79: #{tpu_custom_call.1} parent=71 // pred_region
          %583 = dma.done %s576, 16
        $region80: #{tpu_custom_call.1} parent=71 // pred_fallthru
          _
        %s584 = sand.u32 %s36, 1
        %s585 = scalar_lea.sflag [#allocation6], %s584
        %s586 = sand.u32 %s316, 1
        %s587 = scalar_lea.vmem [#allocation7], %s586
        // Predicated region
        $region81: #{tpu_custom_call.1} parent=71 // pred_check
          %p588 = pneg %p329
        $region82: #{tpu_custom_call.1} parent=71 // pred_check_branch
          %590 = sbr.rel (%p588) target = $region84
        $region83: #{tpu_custom_call.1} parent=71 // pred_region
          %592 = dma.done %s585, 16
        $region84: #{tpu_custom_call.1} parent=71 // pred_fallthru
          _
        %s593 = sand.u32 %s368, 1
        %s594 = scalar_lea.sflag [#allocation9], %s593
        %s595 = sand.u32 %s368, 1
        %s596 = scalar_lea.vmem [#allocation8], %s595
        // Predicated region
        $region85: #{tpu_custom_call.1} parent=71 // pred_check
          %p597 = pneg %p381
        $region86: #{tpu_custom_call.1} parent=71 // pred_check_branch
          %599 = sbr.rel (%p597) target = $region88
        $region87: #{tpu_custom_call.1} parent=71 // pred_region
          %601 = dma.done %s594, 16
        $region88: #{tpu_custom_call.1} parent=71 // pred_fallthru
          _
        %s602 = sand.u32 %s56, 1
        %s603 = scalar_lea.sflag [#allocation3], %s602
        %s604 = sand.u32 %s56, 1
        %s605 = smul.addr %s604, 8
        %s606 = scalar_lea.vmem [#allocation2], %s605
        %p607 = pneg %p69
        %p608 = pneg %p66
        %p609 = scmp.lt.s32.totalorder %s41, 1
        %s610 = scalar_select %p609, %s41, 1
        %s611 = scalar_lea.vmem %s1, %s610
        %p612 = pneg %p95
        %p613 = pneg %p92
        %p614 = scmp.lt.s32.totalorder %s41, 1
        %s615 = scalar_select %p614, %s41, 1
        %s616 = scalar_lea.vmem %s2, %s615
        %p617 = pneg %p121
        %p618 = pneg %p118
        %p619 = scmp.lt.s32.totalorder %s41, 1
        %s620 = scalar_select %p619, %s41, 1
        %s621 = smul.addr %s620, 4
        %s622 = smul.addr %s621, 4
        %s623 = scalar_lea.vmem %s3, %s622
        %p624 = pneg %p147
        %p625 = pneg %p144
        %p626 = scmp.lt.s32.totalorder %s41, 1
        %s627 = scalar_select %p626, %s41, 1
        %s628 = scalar_lea.vmem %s4, %s627
        %p629 = pneg %p173
        %p630 = pneg %p170
        %p631 = scmp.lt.s32.totalorder %s41, 1
        %s632 = scalar_select %p631, %s41, 1
        %s633 = smul.addr %s632, 4
        %s634 = smul.addr %s633, 4
        %s635 = scalar_lea.vmem %s5, %s634
        %p636 = pneg %p199
        %p637 = pneg %p196
        %p638 = scmp.lt.s32.totalorder %s41, 1
        %s639 = scalar_select %p638, %s41, 1
        %s640 = scalar_lea.vmem %s6, %s639
        %p641 = pneg %p225
        %p642 = pneg %p222
        %p643 = scmp.lt.s32.totalorder %s41, 1
        %s644 = scalar_select %p643, %s41, 1
        %s645 = scalar_lea.vmem %s7, %s644
        %p646 = pneg %p251
        %p647 = pneg %p248
        %s648 = sand.u32 %s36, 1
        %s649 = scalar_lea.sflag [#allocation6], %s648
        %s650 = sand.u32 %s264, 1
        %s651 = scalar_lea.vmem [#allocation5], %s650
        %p652 = pneg %p277
        %p653 = pneg %p274
        %p654 = scmp.lt.s32.totalorder %s41, 1
        %s655 = scalar_select %p654, %s41, 1
        %s656 = smul.addr %s655, 4
        %s657 = smul.addr %s656, 4
        %s658 = scalar_lea.vmem %s9, %s657
        %p659 = pneg %p303
        %p660 = pneg %p300
        %s661 = sand.u32 %s36, 1
        %s662 = scalar_lea.sflag [#allocation6], %s661
        %s663 = sand.u32 %s316, 1
        %s664 = scalar_lea.vmem [#allocation7], %s663
        %p665 = pneg %p329
        %p666 = pneg %p326
        %p667 = scmp.lt.s32.totalorder %s41, 1
        %s668 = scalar_select %p667, %s41, 1
        %s669 = smul.addr %s668, 8
        %s670 = smul.addr %s669, 4
        %s671 = scalar_lea.vmem %s11, %s670
        %p672 = pneg %p355
        %p673 = pneg %p352
        %s674 = sand.u32 %s368, 1
        %s675 = scalar_lea.sflag [#allocation9], %s674
        %s676 = sand.u32 %s368, 1
        %s677 = scalar_lea.vmem [#allocation8], %s676
        %p678 = pneg %p381
        %p679 = pneg %p378
        %p680 = pneg %p407
        %p681 = pneg %p404
        %s682 = sand.u32 %s394, 1
        %s683 = scalar_lea.sflag [#allocation4], %s682
        %s684 = sand.u32 %s394, 1
        %s685 = smul.addr %s684, 8
        %s686 = scalar_lea.vmem [#allocation10], %s685
        %p687 = scmp.lt.s32.totalorder %s41, 1
        %s688 = scalar_select %p687, %s41, 1
        %s689 = scalar_lea.vmem %s1, %s688
        %p690 = scmp.lt.s32.totalorder %s41, 1
        %s691 = scalar_select %p690, %s41, 1
        %s692 = scalar_lea.vmem %s2, %s691
        %p693 = scmp.lt.s32.totalorder %s41, 1
        %s694 = scalar_select %p693, %s41, 1
        %s695 = smul.addr %s694, 4
        %s696 = smul.addr %s695, 4
        %s697 = scalar_lea.vmem %s3, %s696
        %p698 = scmp.lt.s32.totalorder %s41, 1
        %s699 = scalar_select %p698, %s41, 1
        %s700 = scalar_lea.vmem %s4, %s699
        %p701 = scmp.lt.s32.totalorder %s41, 1
        %s702 = scalar_select %p701, %s41, 1
        %s703 = smul.addr %s702, 4
        %s704 = smul.addr %s703, 4
        %s705 = scalar_lea.vmem %s5, %s704
        %p706 = scmp.lt.s32.totalorder %s41, 1
        %s707 = scalar_select %p706, %s41, 1
        %s708 = scalar_lea.vmem %s6, %s707
        %p709 = scmp.lt.s32.totalorder %s41, 1
        %s710 = scalar_select %p709, %s41, 1
        %s711 = scalar_lea.vmem %s7, %s710
        %p712 = scmp.lt.s32.totalorder %s41, 1
        %s713 = scalar_select %p712, %s41, 1
        %s714 = smul.addr %s713, 4
        %s715 = smul.addr %s714, 4
        %s716 = scalar_lea.vmem %s9, %s715
        %p717 = scmp.lt.s32.totalorder %s41, 1
        %s718 = scalar_select %p717, %s41, 1
        %s719 = smul.addr %s718, 8
        %s720 = smul.addr %s719, 4
        %s721 = scalar_lea.vmem %s11, %s720
        %p723 = scmp.eq.s32.totalorder %s41, 0
        // Predicated region
        $region89: #{tpu_custom_call.1} parent=71 // pred_check
          %p724 = pneg %p723
        $region90: #{tpu_custom_call.1} parent=71 // pred_check_branch
          %726 = sbr.rel (%p724) target = $region92
        $region91: #{tpu_custom_call.1} parent=71 // pred_region
          %v727 = vld [vmem:[%s569] sm:$0xff]
          %vm728 = vcmask 261120
          %729 = vst.msk [vmem:[%s686] sm:$0xff] %vm728, %v727
        $region92: #{tpu_custom_call.1} parent=71 // pred_fallthru
          _
        %v730 = vld [vmem:[%s686] sm:$0xff]
        %v731 = vld [vmem:[%s689] sm:$0x1]
        %v732 = vld [vmem:[%s692] sm:$0x1]
        %vm733 = vcmask 261120
        %v734 = vsel %vm733, %v730, 0.0
        %735 = vadd.xlane.f32.xlu0 %v734
        %v736 = vpop.xlane.xlu0 %735
        %v737 = vrcp.pop 32.0
        %v738 = vmul.f32 32.0, %v737
        %v739 = vsub.f32 1.0, %v738
        %v740 = vmul.f32 %v737, %v739
        %v741 = vadd.f32 %v737, %v740
        %vm742 = vweird.f32 %v737
        %v743 = vsel %vm742, %v737, %v741
        %v744 = vmul.f32 %v736, %v743
        %v745 = vsub.f32 %v730, %v744
        %v746 = vmul.f32 %v745, %v745
        %v747 = vsel %vm733, %v746, 0.0
        %748 = vadd.xlane.f32.xlu0 %v747
        %v749 = vpop.xlane.xlu0 %748
        %v750 = vmul.f32 %v749, %v743
        %v751 = vadd.f32 %v750, 1e-05
        %v752 = vrsqrt.pop %v751
        %v753 = vmul.f32 %v752, %v751
        %v754 = vmul.f32 %v753, %v752
        %v755 = vmul.f32 0.5, %v754
        %v756 = vsub.f32 1.5, %v755
        %v757 = vmul.f32 %v752, %v756
        %vm758 = vweird.f32 %v751
        %vm759 = vweird.f32 %v752
        %vm760 = vmor %vm758, %vm759
        %v761 = vsel %vm760, %v752, %v757
        %v762 = vmul.f32 %v745, %v761
        %v764 = vperm.slane %v731, 0
        %v766 = vmul.f32 %v762, %v764
        %v768 = vperm.slane %v732, 0
        %v770 = vadd.f32 %v766, %v768
        %v771 = vpack.c.bf16 %v770, %v770
        %v772 = vld [vmem:[%s697] sm:$0xf]
        %v773 = vld [vmem:[%s697 + $0x4] sm:$0xf]
        %v774 = vld [vmem:[%s697 + $0x8] sm:$0xf]
        %v775 = vld [vmem:[%s697 + $0xc] sm:$0xf]
        %v776 = vld [vmem:[%s700] sm:$0x1]
        %v778 = vperm.slane %v776, 0
        %v784 = vunpack.c.l.b16 %v772
        %v785 = vunpack.c.l.b16 %v773
        %v786 = vunpack.c.l.b16 %v774
        %v787 = vunpack.c.l.b16 %v775
        %v788 = vpack.c.b16 %v785, %v784
        %v789 = vpack.c.b16 %v787, %v786
        %v793 = vsel %vm733, %v771, 0
        %795 = vmatpush.bf16.msra.mxu0 0
        %796 = vmatpush.bf16.msra.mxu0 0
        %797 = vmatpush.bf16.msra.mxu0 0
        %798 = vmatpush.bf16.msra.mxu0 0
        %799 = vmatpush.bf16.msra.mxu0 0
        %800 = vmatpush.bf16.msra.mxu0 0
        %801 = vmatpush.bf16.msra.mxu0 %v789
        %802 = vmatpush.bf16.msra.mxu0 %v788
        %803 = vmatmul.bf16.gmra.mxu0 %v793
        %v804 = vpop.f32.mrf.mxu0
        %v805 = vadd.f32 %v778, %v804
        %v806 = vpop.f32.mrf.mxu0
        %807 = vdwg.mxu0
        %v808 = vpack.c.bf16 %v805, %v805
        %810 = vrot.lane.b32.xlu0 %v808, 120
        %v811 = vpop.permute.xlu0 %810
        %812 = vrot.lane.b32.xlu0 %v808, 112
        %v813 = vpop.permute.xlu0 %812
        %814 = vrot.lane.b32.xlu0 %v808, 104
        %v815 = vpop.permute.xlu0 %814
        %v816 = vunpack.c.l.b16 %v808
        %v817 = vpack.c.b16 %v816, %v816
        %818 = vrot.lane.b32.xlu0 %v817, 96
        %v819 = vpop.permute.xlu0 %818
        %vm820 = vcmask 64512
        %v822 = vsel %vm820, %v808, 0
        %v825 = vsel %vm820, %v819, 0
        %827 = vmatpush.bf16.xpose.msra.mxu0 0
        %828 = vmatpush.bf16.xpose.msra.mxu0 0
        %829 = vmatpush.bf16.xpose.msra.mxu0 0
        %830 = vmatpush.bf16.xpose.msra.mxu0 0
        %831 = vmatpush.bf16.xpose.msra.mxu0 0
        %832 = vmatpush.bf16.xpose.msra.mxu0 0
        %833 = vmatpush.bf16.xpose.msra.mxu0 0
        %834 = vmatpush.bf16.xpose.msra.mxu0 %v825
        %835 = vmatmul.bf16.gmra.mxu0 %v822
        %v836 = vpop.f32.mrf.mxu0
        %v837 = vadd.f32 0.0, %v836
        %v838 = vpop.f32.mrf.mxu0
        %839 = vdwg.mxu0
        %v840 = vunpack.c.l.b16 %v811
        %v841 = vpack.c.b16 %v840, %v840
        %842 = vrot.lane.b32.xlu0 %v841, 96
        %v843 = vpop.permute.xlu0 %842
        %v845 = vsel %vm820, %v811, 0
        %v848 = vsel %vm820, %v843, 0
        %850 = vmatpush.bf16.xpose.msra.mxu0 0
        %851 = vmatpush.bf16.xpose.msra.mxu0 0
        %852 = vmatpush.bf16.xpose.msra.mxu0 0
        %853 = vmatpush.bf16.xpose.msra.mxu0 0
        %854 = vmatpush.bf16.xpose.msra.mxu0 0
        %855 = vmatpush.bf16.xpose.msra.mxu0 0
        %856 = vmatpush.bf16.xpose.msra.mxu0 0
        %857 = vmatpush.bf16.xpose.msra.mxu0 %v848
        %858 = vmatmul.bf16.gmra.mxu0 %v845
        %v859 = vpop.f32.mrf.mxu0
        %v860 = vadd.f32 0.0, %v859
        %v861 = vpop.f32.mrf.mxu0
        %862 = vdwg.mxu0
        %v863 = vunpack.c.l.b16 %v813
        %v864 = vpack.c.b16 %v863, %v863
        %865 = vrot.lane.b32.xlu0 %v864, 96
        %v866 = vpop.permute.xlu0 %865
        %v868 = vsel %vm820, %v813, 0
        %v871 = vsel %vm820, %v866, 0
        %873 = vmatpush.bf16.xpose.msra.mxu0 0
        %874 = vmatpush.bf16.xpose.msra.mxu0 0
        %875 = vmatpush.bf16.xpose.msra.mxu0 0
        %876 = vmatpush.bf16.xpose.msra.mxu0 0
        %877 = vmatpush.bf16.xpose.msra.mxu0 0
        %878 = vmatpush.bf16.xpose.msra.mxu0 0
        %879 = vmatpush.bf16.xpose.msra.mxu0 0
        %880 = vmatpush.bf16.xpose.msra.mxu0 %v871
        %881 = vmatmul.bf16.gmra.mxu0 %v868
        %v882 = vpop.f32.mrf.mxu0
        %v883 = vadd.f32 0.0, %v882
        %v884 = vpop.f32.mrf.mxu0
        %885 = vdwg.mxu0
        %v886 = vunpack.c.l.b16 %v815
        %v887 = vpack.c.b16 %v886, %v886
        %888 = vrot.lane.b32.xlu0 %v887, 96
        %v889 = vpop.permute.xlu0 %888
        %v891 = vsel %vm820, %v815, 0
        %v894 = vsel %vm820, %v889, 0
        %896 = vmatpush.bf16.xpose.msra.mxu0 0
        %897 = vmatpush.bf16.xpose.msra.mxu0 0
        %898 = vmatpush.bf16.xpose.msra.mxu0 0
        %899 = vmatpush.bf16.xpose.msra.mxu0 0
        %900 = vmatpush.bf16.xpose.msra.mxu0 0
        %901 = vmatpush.bf16.xpose.msra.mxu0 0
        %902 = vmatpush.bf16.xpose.msra.mxu0 0
        %903 = vmatpush.bf16.xpose.msra.mxu0 %v894
        %904 = vmatmul.bf16.gmra.mxu0 %v891
        %v905 = vpop.f32.mrf.mxu0
        %v906 = vadd.f32 0.0, %v905
        %v907 = vpop.f32.mrf.mxu0
        %908 = vdwg.mxu0
        %v909 = vsel %vm820, %v837, -inf
        %910 = vmax.xlane.f32.xlu0 %v909
        %v911 = vpop.xlane.xlu0 %910
        %v912 = vsel %vm820, %v860, -inf
        %913 = vmax.xlane.f32.xlu0 %v912
        %v914 = vpop.xlane.xlu0 %913
        %v915 = vsel %vm820, %v883, -inf
        %916 = vmax.xlane.f32.xlu0 %v915
        %v917 = vpop.xlane.xlu0 %916
        %v918 = vsel %vm820, %v906, -inf
        %919 = vmax.xlane.f32.xlu0 %v918
        %v920 = vpop.xlane.xlu0 %919
        %v921 = vsub.f32 %v837, %v911
        %v922 = vsub.f32 %v860, %v914
        %v923 = vsub.f32 %v883, %v917
        %v924 = vsub.f32 %v906, %v920
        %v925 = vmul.f32 %v921, 1.442695
        %v926 = vpow.pop %v925
        %v927 = vmul.f32 %v922, 1.442695
        %v928 = vpow.pop %v927
        %v929 = vmul.f32 %v923, 1.442695
        %v930 = vpow.pop %v929
        %v931 = vmul.f32 %v924, 1.442695
        %v932 = vpow.pop %v931
        %v933 = vsel %vm820, %v926, 0.0
        %934 = vadd.xlane.f32.xlu0 %v933
        %v935 = vpop.xlane.xlu0 %934
        %v936 = vsel %vm820, %v928, 0.0
        %937 = vadd.xlane.f32.xlu0 %v936
        %v938 = vpop.xlane.xlu0 %937
        %v939 = vsel %vm820, %v930, 0.0
        %940 = vadd.xlane.f32.xlu0 %v939
        %v941 = vpop.xlane.xlu0 %940
        %v942 = vsel %vm820, %v932, 0.0
        %943 = vadd.xlane.f32.xlu0 %v942
        %v944 = vpop.xlane.xlu0 %943
        %v945 = vrcp.pop %v935
        %v946 = vrcp.pop %v938
        %v947 = vrcp.pop %v941
        %v948 = vrcp.pop %v944
        %v949 = vmul.f32 %v926, %v945
        %v950 = vmul.f32 %v928, %v946
        %v951 = vmul.f32 %v930, %v947
        %v952 = vmul.f32 %v932, %v948
        %v953 = vpack.c.bf16 %v949, %v949
        %v954 = vpack.c.bf16 %v950, %v950
        %v955 = vpack.c.bf16 %v951, %v951
        %v956 = vpack.c.bf16 %v952, %v952
        %957 = vrot.lane.b32.xlu0 %v817, 64
        %v958 = vpop.permute.xlu0 %957
        %v960 = vsel %vm820, %v953, 0
        %vm962 = vcmask 1043456
        %v964 = vsel %vm962, %v958, 0
        %966 = vmatpush.bf16.msra.mxu0 0
        %967 = vmatpush.bf16.msra.mxu0 0
        %968 = vmatpush.bf16.msra.mxu0 0
        %969 = vmatpush.bf16.msra.mxu0 0
        %970 = vmatpush.bf16.msra.mxu0 0
        %971 = vmatpush.bf16.msra.mxu0 0
        %972 = vmatpush.bf16.msra.mxu0 0
        %973 = vmatpush.bf16.msra.mxu0 %v964
        %974 = vmatmul.bf16.gmra.mxu0 %v960
        %v975 = vpop.f32.mrf.mxu0
        %v976 = vadd.f32 0.0, %v975
        %v977 = vpop.f32.mrf.mxu0
        %978 = vdwg.mxu0
        %979 = vrot.lane.b32.xlu0 %v841, 64
        %v980 = vpop.permute.xlu0 %979
        %v982 = vsel %vm820, %v954, 0
        %v985 = vsel %vm962, %v980, 0
        %987 = vmatpush.bf16.msra.mxu0 0
        %988 = vmatpush.bf16.msra.mxu0 0
        %989 = vmatpush.bf16.msra.mxu0 0
        %990 = vmatpush.bf16.msra.mxu0 0
        %991 = vmatpush.bf16.msra.mxu0 0
        %992 = vmatpush.bf16.msra.mxu0 0
        %993 = vmatpush.bf16.msra.mxu0 0
        %994 = vmatpush.bf16.msra.mxu0 %v985
        %995 = vmatmul.bf16.gmra.mxu0 %v982
        %v996 = vpop.f32.mrf.mxu0
        %v997 = vadd.f32 0.0, %v996
        %v998 = vpop.f32.mrf.mxu0
        %999 = vdwg.mxu0
        %1000 = vrot.lane.b32.xlu0 %v864, 64
        %v1001 = vpop.permute.xlu0 %1000
        %v1003 = vsel %vm820, %v955, 0
        %v1006 = vsel %vm962, %v1001, 0
        %1008 = vmatpush.bf16.msra.mxu0 0
        %1009 = vmatpush.bf16.msra.mxu0 0
        %1010 = vmatpush.bf16.msra.mxu0 0
        %1011 = vmatpush.bf16.msra.mxu0 0
        %1012 = vmatpush.bf16.msra.mxu0 0
        %1013 = vmatpush.bf16.msra.mxu0 0
        %1014 = vmatpush.bf16.msra.mxu0 0
        %1015 = vmatpush.bf16.msra.mxu0 %v1006
        %1016 = vmatmul.bf16.gmra.mxu0 %v1003
        %v1017 = vpop.f32.mrf.mxu0
        %v1018 = vadd.f32 0.0, %v1017
        %v1019 = vpop.f32.mrf.mxu0
        %1020 = vdwg.mxu0
        %1021 = vrot.lane.b32.xlu0 %v887, 64
        %v1022 = vpop.permute.xlu0 %1021
        %v1024 = vsel %vm820, %v956, 0
        %v1027 = vsel %vm962, %v1022, 0
        %1029 = vmatpush.bf16.msra.mxu0 0
        %1030 = vmatpush.bf16.msra.mxu0 0
        %1031 = vmatpush.bf16.msra.mxu0 0
        %1032 = vmatpush.bf16.msra.mxu0 0
        %1033 = vmatpush.bf16.msra.mxu0 0
        %1034 = vmatpush.bf16.msra.mxu0 0
        %1035 = vmatpush.bf16.msra.mxu0 0
        %1036 = vmatpush.bf16.msra.mxu0 %v1027
        %1037 = vmatmul.bf16.gmra.mxu0 %v1024
        %v1038 = vpop.f32.mrf.mxu0
        %v1039 = vadd.f32 0.0, %v1038
        %v1040 = vpop.f32.mrf.mxu0
        %1041 = vdwg.mxu0
        %1043 = vrot.lane.b32.xlu0 %v997, 8
        %v1044 = vpop.permute.xlu0 %1043
        %1047 = vrot.lane.b32.xlu0 %v1018, 16
        %v1048 = vpop.permute.xlu0 %1047
        %1051 = vrot.lane.b32.xlu0 %v1039, 24
        %v1052 = vpop.permute.xlu0 %1051
        %v1054 = vsel %vm820, %v976, %v1044
        %vm1055 = vcmask 130048
        %v1056 = vsel %vm1055, %v1054, %v1048
        %vm1057 = vcmask 195584
        %v1058 = vsel %vm1057, %v1056, %v1052
        %v1059 = vpack.c.bf16 %v1058, %v1058
        %v1060 = vld [vmem:[%s705] sm:$0xf]
        %v1061 = vld [vmem:[%s705 + $0x4] sm:$0xf]
        %v1062 = vld [vmem:[%s705 + $0x8] sm:$0xf]
        %v1063 = vld [vmem:[%s705 + $0xc] sm:$0xf]
        %v1064 = vld [vmem:[%s708] sm:$0x1]
        %v1066 = vperm.slane %v1064, 0
        %v1072 = vunpack.c.l.b16 %v1060
        %v1073 = vunpack.c.l.b16 %v1061
        %v1074 = vunpack.c.l.b16 %v1062
        %v1075 = vunpack.c.l.b16 %v1063
        %v1076 = vpack.c.b16 %v1073, %v1072
        %v1077 = vpack.c.b16 %v1075, %v1074
        %v1081 = vsel %vm733, %v1059, 0
        %1083 = vmatpush.bf16.msra.mxu0 0
        %1084 = vmatpush.bf16.msra.mxu0 0
        %1085 = vmatpush.bf16.msra.mxu0 0
        %1086 = vmatpush.bf16.msra.mxu0 0
        %1087 = vmatpush.bf16.msra.mxu0 0
        %1088 = vmatpush.bf16.msra.mxu0 0
        %1089 = vmatpush.bf16.msra.mxu0 %v1077
        %1090 = vmatpush.bf16.msra.mxu0 %v1076
        %1091 = vmatmul.bf16.gmra.mxu0 %v1081
        %v1092 = vpop.f32.mrf.mxu0
        %v1093 = vadd.f32 %v1066, %v1092
        %v1094 = vpop.f32.mrf.mxu0
        %1095 = vdwg.mxu0
        %v1096 = vadd.f32 %v730, %v1093
        %v1097 = vld [vmem:[%s711] sm:$0x1]
        %v1098 = vld [vmem:[%s578] sm:$0x1]
        %v1099 = vsel %vm733, %v1096, 0.0
        %1100 = vadd.xlane.f32.xlu0 %v1099
        %v1101 = vpop.xlane.xlu0 %1100
        %v1102 = vmul.f32 %v1101, %v743
        %v1103 = vsub.f32 %v1096, %v1102
        %v1104 = vmul.f32 %v1103, %v1103
        %v1105 = vsel %vm733, %v1104, 0.0
        %1106 = vadd.xlane.f32.xlu0 %v1105
        %v1107 = vpop.xlane.xlu0 %1106
        %v1108 = vmul.f32 %v1107, %v743
        %v1109 = vadd.f32 %v1108, 1e-05
        %v1110 = vrsqrt.pop %v1109
        %v1111 = vmul.f32 %v1110, %v1109
        %v1112 = vmul.f32 %v1111, %v1110
        %v1113 = vmul.f32 0.5, %v1112
        %v1114 = vsub.f32 1.5, %v1113
        %v1115 = vmul.f32 %v1110, %v1114
        %vm1116 = vweird.f32 %v1109
        %vm1117 = vweird.f32 %v1110
        %vm1118 = vmor %vm1116, %vm1117
        %v1119 = vsel %vm1118, %v1110, %v1115
        %v1120 = vmul.f32 %v1103, %v1119
        %v1122 = vperm.slane %v1097, 0
        %v1124 = vmul.f32 %v1120, %v1122
        %v1126 = vperm.slane %v1098, 0
        %v1128 = vadd.f32 %v1124, %v1126
        %v1129 = vpack.c.bf16 %v1128, %v1128
        %v1130 = vld [vmem:[%s716] sm:$0xf]
        %v1131 = vld [vmem:[%s716 + $0x4] sm:$0xf]
        %v1132 = vld [vmem:[%s716 + $0x8] sm:$0xf]
        %v1133 = vld [vmem:[%s716 + $0xc] sm:$0xf]
        %v1134 = vld [vmem:[%s587] sm:$0x1]
        %v1136 = vperm.slane %v1134, 0
        %v1142 = vunpack.c.l.b16 %v1130
        %v1143 = vunpack.c.l.b16 %v1131
        %v1144 = vunpack.c.l.b16 %v1132
        %v1145 = vunpack.c.l.b16 %v1133
        %v1146 = vpack.c.b16 %v1143, %v1142
        %v1147 = vpack.c.b16 %v1145, %v1144
        %v1151 = vsel %vm733, %v1129, 0
        %1153 = vmatpush.bf16.msra.mxu0 0
        %1154 = vmatpush.bf16.msra.mxu0 0
        %1155 = vmatpush.bf16.msra.mxu0 0
        %1156 = vmatpush.bf16.msra.mxu0 0
        %1157 = vmatpush.bf16.msra.mxu0 0
        %1158 = vmatpush.bf16.msra.mxu0 0
        %1159 = vmatpush.bf16.msra.mxu0 %v1147
        %1160 = vmatpush.bf16.msra.mxu0 %v1146
        %1161 = vmatmul.bf16.gmra.mxu0 %v1151
        %v1162 = vpop.f32.mrf.mxu0
        %v1163 = vadd.f32 %v1136, %v1162
        %v1164 = vpop.f32.mrf.mxu0
        %1165 = vdwg.mxu0
        %v1166 = vmul.f32 %v1163, 0.5
        %v1167 = vmul.f32 %v1163, %v1163
        %v1168 = vmul.f32 %v1167, %v1163
        %v1169 = vmul.f32 %v1168, 0.044715
        %v1170 = vadd.f32 %v1163, %v1169
        %v1171 = vmul.f32 %v1170, 0.7978846
        %v1172 = vtanh.pop %v1171
        %v1173 = vadd.f32 %v1172, 1.0
        %v1174 = vmul.f32 %v1166, %v1173
        %v1175 = vpack.c.bf16 %v1174, %v1174
        %v1176 = vld [vmem:[%s721] sm:$0xf]
        %v1177 = vld [vmem:[%s721 + $0x4] sm:$0xf]
        %v1178 = vld [vmem:[%s721 + $0x8] sm:$0xf]
        %v1179 = vld [vmem:[%s721 + $0xc] sm:$0xf]
        %v1180 = vld [vmem:[%s721 + $0x10] sm:$0xf]
        %v1181 = vld [vmem:[%s721 + $0x14] sm:$0xf]
        %v1182 = vld [vmem:[%s721 + $0x18] sm:$0xf]
        %v1183 = vld [vmem:[%s721 + $0x1c] sm:$0xf]
        %v1184 = vld [vmem:[%s596] sm:$0x1]
        %v1186 = vperm.slane %v1184, 0
        %v1196 = vunpack.c.l.b16 %v1176
        %v1197 = vunpack.c.l.b16 %v1177
        %v1198 = vunpack.c.l.b16 %v1178
        %v1199 = vunpack.c.l.b16 %v1179
        %v1200 = vunpack.c.l.b16 %v1180
        %v1201 = vunpack.c.l.b16 %v1181
        %v1202 = vunpack.c.l.b16 %v1182
        %v1203 = vunpack.c.l.b16 %v1183
        %v1204 = vpack.c.b16 %v1197, %v1196
        %v1205 = vpack.c.b16 %v1199, %v1198
        %v1206 = vpack.c.b16 %v1201, %v1200
        %v1207 = vpack.c.b16 %v1203, %v1202
        %vm1212 = vcmask 523264
        %v1214 = vsel %vm1212, %v1175, 0
        %1216 = vmatpush.bf16.msra.mxu0 0
        %1217 = vmatpush.bf16.msra.mxu0 0
        %1218 = vmatpush.bf16.msra.mxu0 0
        %1219 = vmatpush.bf16.msra.mxu0 0
        %1220 = vmatpush.bf16.msra.mxu0 %v1207
        %1221 = vmatpush.bf16.msra.mxu0 %v1206
        %1222 = vmatpush.bf16.msra.mxu0 %v1205
        %1223 = vmatpush.bf16.msra.mxu0 %v1204
        %1224 = vmatmul.bf16.gmra.mxu0 %v1214
        %v1225 = vpop.f32.mrf.mxu0
        %v1226 = vadd.f32 %v1186, %v1225
        %v1227 = vpop.f32.mrf.mxu0
        %1228 = vdwg.mxu0
        %v1229 = vadd.f32 %v1096, %v1226
        %1230 = vst.msk [vmem:[%s686] sm:$0xff] %vm733, %v1229
        %s1231 = sand.u32 %s394, 1
        %s1232 = scalar_lea.sflag [#allocation4], %s1231
        %s1233 = sand.u32 %s394, 1
        %s1234 = smul.addr %s1233, 8
        %s1235 = scalar_lea.vmem [#allocation10], %s1234
        // Predicated region
        $region93: #{tpu_custom_call.1} parent=71 // pred_check
          %p1236 = pneg %p404
        $region94: #{tpu_custom_call.1} parent=71 // pred_check_branch
          %1238 = sbr.rel (%p1236) target = $region96
        $region95: #{tpu_custom_call.1} parent=71 // pred_region
          %1240 = vsyncadd %s1232, 0
          %s1241 = smul.addr %s40, 8
          %s1242 = scalar_lea.hbm %s13, %s1241
          %s1244 = sshll.u32 %s1235, 4
          %s1245 = int_to_ptr.vmem [resolvable:$true] %s1244
          %s1246 = sshll.u32 %s1242, 4
          %s1247 = int_to_ptr.hbm [resolvable:$true] %s1246
          %1249 = dma.vmem_to_hbm [thread:$0]  %s1245, 128, %s1247, %s1232
        $region96: #{tpu_custom_call.1} parent=71 // pred_fallthru
          _
      $region72: #{tpu_custom_call.1} parent=5 // pred_fallthru
        _
      %p1250 = scmp.le.s32.totalorder 2, %s31
      // Predicated region
      $region97: #{tpu_custom_call.1} parent=5 // pred_check
        %p1251 = pneg %p1250
      $region98: #{tpu_custom_call.1} parent=5 // pred_check_branch
        %1253 = sbr.rel (%p1251) target = $region100
      $region99: #{tpu_custom_call.1} parent=5 // pred_region
        %s1254 = ssub.s32 %s31, 2
        // Predicated region
        $region101: #{tpu_custom_call.1} parent=99 // pred_check
          %p1255 = pneg %p410
        $region102: #{tpu_custom_call.1} parent=99 // pred_check_branch
          %1257 = sbr.rel (%p1255) target = $region104
        $region103: #{tpu_custom_call.1} parent=99 // pred_region
          %s1258 = sand.u32 %s395, 1
          %s1259 = scalar_lea.sflag [#allocation4], %s1258
          %s1260 = sand.u32 %s395, 1
          %s1261 = smul.addr %s1260, 8
          %s1262 = scalar_lea.vmem [#allocation10], %s1261
          %1264 = dma.done %s1259, 128
        $region104: #{tpu_custom_call.1} parent=99 // pred_fallthru
          _
      $region100: #{tpu_custom_call.1} parent=5 // pred_fallthru
        _
    $region6: #{tpu_custom_call.1} parent=1 // loop_footer
      %s35 = sadd.s32 1, %s31
    $region7: #{tpu_custom_call.1} parent=1 // loop_footer_branch
      %30 = sbr.rel target = $region3
    $region8: #{tpu_custom_call.1} parent=1 // loop_exit
      _
    %1265 = vsyncpa [#allocation3], 1
    %s1266 = scalar_lea.sflag [#allocation3], 1
    %1267 = vsyncpa %s1266, 1
    %1268 = vsyncpa [#allocation6], 1
    %s1269 = scalar_lea.sflag [#allocation6], 1
    %1270 = vsyncpa %s1269, 1
    %1271 = vsyncpa [#allocation9], 1
    %s1272 = scalar_lea.sflag [#allocation9], 1
    %1273 = vsyncpa %s1272, 1
    %1274 = vsyncpa [#allocation4], 1
    %s1275 = scalar_lea.sflag [#allocation4], 1
    %1276 = vsyncpa %s1275, 1

</llo_original>
